<compile_context>
chip_gen: v7x
topology: tpu7x:2x2x1
jax: 0.10.0
libtpu: 0.0.40
codegen_flags: <defaults>
</compile_context>

<pallas_src>
import functools

import numpy as np
import jax
import jax.numpy as jnp
from jax import lax
from jax.experimental import pallas as pl
from jax.experimental.pallas import tpu as pltpu


# -----------------------------------------------------------------------------
# In-kernel helpers
# -----------------------------------------------------------------------------
def _layer_norm(x, gamma, beta, eps=1e-6):
    mean = jnp.mean(x, axis=-1, keepdims=True)
    c = x - mean
    var = jnp.mean(c * c, axis=-1, keepdims=True)
    return c * lax.rsqrt(var + eps) * gamma + beta


def _gelu_tanh(x):
    c = 0.7978845608028654  # sqrt(2/pi)
    return 0.5 * x * (1.0 + jnp.tanh(c * (x + 0.044715 * x * x * x)))


# -----------------------------------------------------------------------------
# Fused EncoderLayer kernel (one batch element per grid step)
# -----------------------------------------------------------------------------
def _encoder_layer_kernel(x_ref, npm_ref, mask_ref,
                          ln1g_ref, ln1b_ref,
                          wqkv_ref, fcw_ref, fcb_ref,
                          ln2g_ref, ln2b_ref,
                          w1_ref, b1_ref, w2_ref, b2_ref,
                          out_ref, attn_ref=None,
                          *, n_head, d_k, d_v, compute_dtype):
    x = x_ref[0]          # (L, D)  f32
    npm = npm_ref[0]      # (L, 1)  non_pad_mask
    mask = mask_ref[0]    # (Lm, L) slf_attn_mask (Lm = 1 key-pad vector, or L full mask)
    L, D = x.shape
    qk_w = n_head * d_k

    # Additive mask bias, computed ONCE (hoisted out of the head loop).
    bias = jnp.where(mask > 0.5, -1e9, 0.0)

    # ---------------- Multi-head self-attention (normalize_before=True) -------
    ln_x = _layer_norm(x, ln1g_ref[...], ln1b_ref[...])
    ln_c = ln_x.astype(compute_dtype)

    # Fused lane-dense QKV projection: (L, D) @ (D, 2*H*d_k + H*d_v)
    qkv = jnp.dot(ln_c, wqkv_ref[...], preferred_element_type=jnp.float32)
    q = qkv[:, :qk_w]
    k = qkv[:, qk_w:2 * qk_w]
    v = qkv[:, 2 * qk_w:]

    inv_temp = 1.0 / float(np.sqrt(d_k))
    ctx_parts = []
    # Static python loop over a small head count (use lax.fori_loop for large H).
    for h in range(n_head):
        qh = q[:, h * d_k:(h + 1) * d_k].astype(compute_dtype)
        kh = k[:, h * d_k:(h + 1) * d_k].astype(compute_dtype)
        vh = v[:, h * d_v:(h + 1) * d_v].astype(compute_dtype)
        # scores = (q @ k^T) / temp  (contraction without materializing a transpose)
        s = lax.dot_general(qh, kh, (((1,), (1,)), ((), ())),
                            preferred_element_type=jnp.float32) * inv_temp
        s = s + bias
        m = jnp.max(s, axis=-1, keepdims=True)
        e = jnp.exp(s - m)
        # EUP reciprocal instead of a VALU divide per (L, L) element.
        p = e * pl.reciprocal(jnp.sum(e, axis=-1, keepdims=True), approx=True)
        if attn_ref is not None:
            attn_ref[0, h] = p.astype(attn_ref.dtype)
        ctx_parts.append(jnp.dot(p.astype(compute_dtype), vh,
                                 preferred_element_type=jnp.float32
                                 ).astype(compute_dtype))
    # (L, H*d_v) -> single lane-dense output projection with contraction K = H*d_v.
    ctx = jnp.concatenate(ctx_parts, axis=-1)
    mha = jnp.dot(ctx, fcw_ref[...], preferred_element_type=jnp.float32) + fcb_ref[...]
    h1 = (mha + x) * npm                         # residual, then *= non_pad_mask

    # ---------------- Position-wise feed-forward (normalize_before=True) -------
    ln_h = _layer_norm(h1, ln2g_ref[...], ln2b_ref[...])
    f = jnp.dot(ln_h.astype(compute_dtype), w1_ref[...],
                preferred_element_type=jnp.float32) + b1_ref[...]
    f = _gelu_tanh(f)
    f = jnp.dot(f.astype(compute_dtype), w2_ref[...],
                preferred_element_type=jnp.float32) + b2_ref[...]
    out = (f + h1) * npm                         # residual, then *= non_pad_mask
    out_ref[0] = out.astype(out_ref.dtype)


# -----------------------------------------------------------------------------
# Wrapper
# -----------------------------------------------------------------------------
def encoder_layer_forward(x, non_pad_mask, slf_attn_mask, params, *,
                          n_head, d_k, d_v,
                          return_attn=True,
                          compute_dtype=jnp.bfloat16,
                          attn_dtype=jnp.bfloat16):
    B, L, D = x.shape
    hidden = params["w1_w"].shape[0]
    cd = compute_dtype
    cd_bytes = np.dtype(cd).itemsize
    qkv_w = 2 * n_head * d_k + n_head * d_v

    # Host-side layout / dtype prep (cheap; fused into the surrounding jit graph).
    wqkv = jnp.concatenate(
        [params["wq"].T, params["wk"].T, params["wv"].T], axis=1).astype(cd)  # (D, qkv_w)
    fcw = params["fc_w"].T.astype(cd)                                         # (H*d_v, D)
    fcb = params["fc_b"].reshape(1, D).astype(jnp.float32)
    ln1_g = params["ln1_g"].reshape(1, D).astype(jnp.float32)
    ln1_b = params["ln1_b"].reshape(1, D).astype(jnp.float32)
    ln2_g = params["ln2_g"].reshape(1, D).astype(jnp.float32)
    ln2_b = params["ln2_b"].reshape(1, D).astype(jnp.float32)
    w1t = params["w1_w"].T.astype(cd)                                         # (D, hidden)
    b1 = params["w1_b"].reshape(1, hidden).astype(jnp.float32)
    w2t = params["w2_w"].T.astype(cd)                                         # (hidden, D)
    b2 = params["w2_b"].reshape(1, D).astype(jnp.float32)

    npm_f = non_pad_mask.astype(jnp.float32)
    mask_f = slf_attn_mask.astype(jnp.float32)
    if mask_f.ndim == 2:                       # (B, L) key-pad -> (B, 1, L)
        mask_f = mask_f[:, None, :]
    Lm = mask_f.shape[1]                       # 1 (key-pad vector) or L (full mask)

    kernel = functools.partial(_encoder_layer_kernel,
                               n_head=n_head, d_k=d_k, d_v=d_v,
                               compute_dtype=cd)

    in_specs = [
        pl.BlockSpec((1, L, D), lambda i: (i, 0, 0)),                  # enc_input
        pl.BlockSpec((1, L, 1), lambda i: (i, 0, 0)),                  # non_pad_mask
        pl.BlockSpec((1, Lm, L), lambda i: (i, 0, 0)),                 # slf_attn_mask
        pl.BlockSpec((1, D), lambda i: (0, 0)),                        # ln1 gamma
        pl.BlockSpec((1, D), lambda i: (0, 0)),                        # ln1 beta
        pl.BlockSpec((D, qkv_w), lambda i: (0, 0)),                    # fused QKV weight
        pl.BlockSpec((n_head * d_v, D), lambda i: (0, 0)),             # fc weight
        pl.BlockSpec((1, D), lambda i: (0, 0)),                        # fc bias
        pl.BlockSpec((1, D), lambda i: (0, 0)),                        # ln2 gamma
        pl.BlockSpec((1, D), lambda i: (0, 0)),                        # ln2 beta
        pl.BlockSpec((D, hidden), lambda i: (0, 0)),                   # w1
        pl.BlockSpec((1, hidden), lambda i: (0, 0)),                   # b1
        pl.BlockSpec((hidden, D), lambda i: (0, 0)),                   # w2
        pl.BlockSpec((1, D), lambda i: (0, 0)),                        # b2
    ]
    if return_attn:
        out_shape = (jax.ShapeDtypeStruct((B, L, D), x.dtype),
                     jax.ShapeDtypeStruct((B, n_head, L, L), attn_dtype))
        out_specs = (pl.BlockSpec((1, L, D), lambda i: (i, 0, 0)),
                     pl.BlockSpec((1, n_head, L, L), lambda i: (i, 0, 0, 0)))
    else:
        out_shape = jax.ShapeDtypeStruct((B, L, D), x.dtype)
        out_specs = pl.BlockSpec((1, L, D), lambda i: (i, 0, 0))

    # --- VMEM budget (per-step blocks, x2 for double buffering, + temporaries) ---
    blk_bytes = (L * D * 4 + L * 4 + Lm * L * 4                        # x, npm, mask
                 + (D * qkv_w + n_head * d_v * D + 2 * D * hidden) * cd_bytes
                 + (5 * D + hidden) * 4                                # LN params + biases
                 + L * D * 4                                           # out
                 + (n_head * L * L * np.dtype(attn_dtype).itemsize if return_attn else 0))
    tmp_bytes = (3 * L * L + L * (qkv_w + hidden + 4 * D)) * 4
    vmem_limit = int(min(64 << 20, max(32 << 20, 2 * blk_bytes + tmp_bytes)))

    # --- Advisory cost estimate so XLA schedules neighbours around the call ---
    flops = 2 * B * L * (D * qkv_w + n_head * L * (d_k + d_v)
                         + n_head * d_v * D + 2 * D * hidden)
    transcendentals = B * (n_head * L * L + L * hidden)
    bytes_accessed = int(
        B * (L * D * 4 + L * 4 + Lm * L * 4)
        + (D * qkv_w + n_head * d_v * D + 2 * D * hidden) * cd_bytes
        + (5 * D + hidden) * 4
        + B * L * D * 4
        + (B * n_head * L * L * np.dtype(attn_dtype).itemsize if return_attn else 0))
    cost = pl.CostEstimate(flops=int(flops), transcendentals=int(transcendentals),
                           bytes_accessed=bytes_accessed)

    result = pl.pallas_call(
        kernel,
        out_shape=out_shape,
        grid=(B,),
        in_specs=in_specs,
        out_specs=out_specs,
        compiler_params=pltpu.CompilerParams(
            dimension_semantics=("parallel",),
            vmem_limit_bytes=vmem_limit),
        cost_estimate=cost,
    )(x, npm_f, mask_f, ln1_g, ln1_b, wqkv, fcw, fcb,
      ln2_g, ln2_b, w1t, b1, w2t, b2)
    return result


# -----------------------------------------------------------------------------
# Parameters (deterministic; shapes follow EncoderLayer.__init__)
# -----------------------------------------------------------------------------
def init_params(key, d_model, hidden, n_head, d_k, d_v):
    ks = jax.random.split(key, 9)

    def xavier(k, shape):
        fan_out, fan_in = shape
        bound = float(np.sqrt(6.0 / (fan_in + fan_out)))
        return jax.random.uniform(k, shape, jnp.float32, -bound, bound)

    def unif(k, fan_in, shape):
        bound = 1.0 / float(np.sqrt(fan_in))
        return jax.random.uniform(k, shape, jnp.float32, -bound, bound)

    p = {}
    p["wq"] = xavier(ks[0], (n_head * d_k, d_model))       # w_qs.weight
    p["wk"] = xavier(ks[1], (n_head * d_k, d_model))       # w_ks.weight
    p["wv"] = xavier(ks[2], (n_head * d_v, d_model))       # w_vs.weight
    p["fc_w"] = xavier(ks[3], (d_model, n_head * d_v))     # fc.weight
    p["fc_b"] = unif(ks[4], n_head * d_v, (d_model,))      # fc.bias
    p["ln1_g"] = jnp.ones((d_model,), jnp.float32)         # MHA layer_norm
    p["ln1_b"] = jnp.zeros((d_model,), jnp.float32)
    p["w1_w"] = unif(ks[5], d_model, (hidden, d_model))    # pos_ffn.w_1
    p["w1_b"] = unif(ks[6], d_model, (hidden,))
    p["w2_w"] = unif(ks[7], hidden, (d_model, hidden))     # pos_ffn.w_2
    p["w2_b"] = unif(ks[8], hidden, (d_model,))
    p["ln2_g"] = jnp.ones((d_model,), jnp.float32)         # pos_ffn.layer_norm
    p["ln2_b"] = jnp.zeros((d_model,), jnp.float32)
    return p


# -----------------------------------------------------------------------------
# Pure-JAX reference (eval-mode torch semantics, exact-erf GELU, f32) for checking
# -----------------------------------------------------------------------------
def reference_forward(x, non_pad_mask, slf_attn_mask, params, *, n_head, d_k, d_v):
    B, L, D = x.shape

    def ln(y, g, b):
        mean = y.mean(-1, keepdims=True)
        var = ((y - mean) ** 2).mean(-1, keepdims=True)
        return (y - mean) / jnp.sqrt(var + 1e-6) * g + b

    lnx = ln(x, params["ln1_g"], params["ln1_b"])
    q = (lnx @ params["wq"].T).reshape(B, L, n_head, d_k).transpose(0, 2, 1, 3)
    k = (lnx @ params["wk"].T).reshape(B, L, n_head, d_k).transpose(0, 2, 1, 3)
    v = (lnx @ params["wv"].T).reshape(B, L, n_head, d_v).transpose(0, 2, 1, 3)
    s = jnp.einsum("bhqd,bhkd->bhqk", q / np.sqrt(d_k), k)
    s = jnp.where(slf_attn_mask[:, None, :, :] > 0.5, -1e9, s)
    attn = jax.nn.softmax(s, axis=-1)
    ctx = jnp.einsum("bhqk,bhkd->bhqd", attn, v)
    ctx = ctx.transpose(0, 2, 1, 3).reshape(B, L, n_head * d_v)
    mha = ctx @ params["fc_w"].T + params["fc_b"]
    h1 = (mha + x) * non_pad_mask
    lnh = ln(h1, params["ln2_g"], params["ln2_b"])
    f = jax.nn.gelu(lnh @ params["w1_w"].T + params["w1_b"], approximate=False)
    f = f @ params["w2_w"].T + params["w2_b"]
    out = (f + h1) * non_pad_mask
    return out, attn


if __name__ == "__main__":
    key = jax.random.PRNGKey(0)
    k_in, k_par = jax.random.split(key)

    B, L, D = 2, 16, 32
    hidden, n_head, d_k, d_v = 64, 4, 8, 8

    x = jax.random.normal(k_in, (B, L, D), jnp.float32)
    lengths = jnp.array([L, 11], jnp.int32)
    pos = jnp.arange(L)
    pad = pos[None, :] >= lengths[:, None]                       # True where padded
    non_pad_mask = (~pad).astype(jnp.float32)[..., None]         # (B, L, 1)
    key_pad_mask = pad.astype(jnp.float32)[:, None, :]           # (B, 1, L) for the kernel
    slf_attn_mask = jnp.broadcast_to(pad[:, None, :], (B, L, L)).astype(jnp.float32)

    params = init_params(k_par, D, hidden, n_head, d_k, d_v)

    fwd = jax.jit(functools.partial(encoder_layer_forward,
                                    n_head=n_head, d_k=d_k, d_v=d_v,
                                    return_attn=True))
    out, attn = fwd(x, non_pad_mask, key_pad_mask, params)
    out = jax.block_until_ready(out)
    attn = jax.block_until_ready(attn)

    assert out.shape == (B, L, D), out.shape
    assert attn.shape == (B, n_head, L, L), attn.shape

    ref_out, ref_attn = reference_forward(x, non_pad_mask, slf_attn_mask, params,
                                          n_head=n_head, d_k=d_k, d_v=d_v)
    # bf16 MXU operands + tanh-GELU + approx-reciprocal softmax -> slightly looser tol.
    ok = (jnp.allclose(out, ref_out, rtol=5e-2, atol=5e-2)
          and jnp.allclose(attn.astype(jnp.float32), ref_attn, rtol=5e-2, atol=5e-2))
    if not ok:
        raise SystemExit("mismatch vs reference")
    print("KERNEL_OK")
</pallas_src>

<mosaic_0001>
module attributes {stable_mosaic.version = 11 : i64} {
  func.func @_encoder_layer_kernel(%arg0: i32, %arg1: memref<1x16x32xf32, #tpu.memory_space<vmem>>, %arg2: memref<1x16x1xf32, #tpu.memory_space<vmem>>, %arg3: memref<1x1x16xf32, #tpu.memory_space<vmem>>, %arg4: memref<1x32xf32, #tpu.memory_space<vmem>>, %arg5: memref<1x32xf32, #tpu.memory_space<vmem>>, %arg6: memref<32x96xbf16, #tpu.memory_space<vmem>>, %arg7: memref<32x32xbf16, #tpu.memory_space<vmem>>, %arg8: memref<1x32xf32, #tpu.memory_space<vmem>>, %arg9: memref<1x32xf32, #tpu.memory_space<vmem>>, %arg10: memref<1x32xf32, #tpu.memory_space<vmem>>, %arg11: memref<32x64xbf16, #tpu.memory_space<vmem>>, %arg12: memref<1x64xf32, #tpu.memory_space<vmem>>, %arg13: memref<64x32xbf16, #tpu.memory_space<vmem>>, %arg14: memref<1x32xf32, #tpu.memory_space<vmem>>, %arg15: memref<1x16x32xf32, #tpu.memory_space<vmem>>, %arg16: memref<1x4x16x16xbf16, #tpu.memory_space<vmem>>) attributes {dimension_semantics = [#tpu.dimension_semantics<parallel>], iteration_bounds = array<i64: 2>, scalar_prefetch = 0 : i64, scratch_operands = 0 : i64, tpu.core_type = #tpu.core_type<tc>, window_params = [{transform_indices = @transform_0, window_bounds = array<i64: 1, 16, 32>}, {transform_indices = @transform_1, window_bounds = array<i64: 1, 16, 1>}, {transform_indices = @transform_2, window_bounds = array<i64: 1, 1, 16>}, {pipeline_mode = #tpu.pipeline_mode<synchronous>, transform_indices = @transform_3, window_bounds = array<i64: 1, 32>}, {pipeline_mode = #tpu.pipeline_mode<synchronous>, transform_indices = @transform_4, window_bounds = array<i64: 1, 32>}, {pipeline_mode = #tpu.pipeline_mode<synchronous>, transform_indices = @transform_5, window_bounds = array<i64: 32, 96>}, {pipeline_mode = #tpu.pipeline_mode<synchronous>, transform_indices = @transform_6, window_bounds = array<i64: 32, 32>}, {pipeline_mode = #tpu.pipeline_mode<synchronous>, transform_indices = @transform_7, window_bounds = array<i64: 1, 32>}, {pipeline_mode = #tpu.pipeline_mode<synchronous>, transform_indices = @transform_8, window_bounds = array<i64: 1, 32>}, {pipeline_mode = #tpu.pipeline_mode<synchronous>, transform_indices = @transform_9, window_bounds = array<i64: 1, 32>}, {pipeline_mode = #tpu.pipeline_mode<synchronous>, transform_indices = @transform_10, window_bounds = array<i64: 32, 64>}, {pipeline_mode = #tpu.pipeline_mode<synchronous>, transform_indices = @transform_11, window_bounds = array<i64: 1, 64>}, {pipeline_mode = #tpu.pipeline_mode<synchronous>, transform_indices = @transform_12, window_bounds = array<i64: 64, 32>}, {pipeline_mode = #tpu.pipeline_mode<synchronous>, transform_indices = @transform_13, window_bounds = array<i64: 1, 32>}, {transform_indices = @transform_14, window_bounds = array<i64: 1, 16, 32>}, {transform_indices = @transform_15, window_bounds = array<i64: 1, 4, 16, 16>}]} {
    %c0 = arith.constant 0 : index
    %c0_0 = arith.constant 0 : index
    %c0_1 = arith.constant 0 : index
    %0 = vector.load %arg1[%c0, %c0_0, %c0_1] : memref<1x16x32xf32, #tpu.memory_space<vmem>>, vector<1x16x32xf32>
    %1 = vector.shape_cast %0 : vector<1x16x32xf32> to vector<16x32xf32>
    %c0_2 = arith.constant 0 : index
    %c0_3 = arith.constant 0 : index
    %c0_4 = arith.constant 0 : index
    %2 = vector.load %arg2[%c0_2, %c0_3, %c0_4] : memref<1x16x1xf32, #tpu.memory_space<vmem>>, vector<1x16x1xf32>
    %3 = vector.shape_cast %2 : vector<1x16x1xf32> to vector<16x1xf32>
    %c0_5 = arith.constant 0 : index
    %c0_6 = arith.constant 0 : index
    %c0_7 = arith.constant 0 : index
    %4 = vector.load %arg3[%c0_5, %c0_6, %c0_7] : memref<1x1x16xf32, #tpu.memory_space<vmem>>, vector<1x1x16xf32>
    %5 = vector.shape_cast %4 : vector<1x1x16xf32> to vector<1x16xf32>
    %cst = arith.constant 5.000000e-01 : f32
    %6 = vector.broadcast %cst : f32 to vector<1x16xf32>
    %7 = arith.cmpf ogt, %5, %6 : vector<1x16xf32>
    %cst_8 = arith.constant -1.000000e+09 : f32
    %cst_9 = arith.constant 0.000000e+00 : f32
    %8 = vector.broadcast %cst_8 : f32 to vector<1x16xf32>
    %9 = vector.broadcast %cst_9 : f32 to vector<1x16xf32>
    %10 = arith.select %7, %8, %9 : vector<1x16xi1>, vector<1x16xf32>
    %c0_10 = arith.constant 0 : index
    %c0_11 = arith.constant 0 : index
    %11 = vector.load %arg4[%c0_10, %c0_11] : memref<1x32xf32, #tpu.memory_space<vmem>>, vector<1x32xf32>
    %c0_12 = arith.constant 0 : index
    %c0_13 = arith.constant 0 : index
    %12 = vector.load %arg5[%c0_12, %c0_13] : memref<1x32xf32, #tpu.memory_space<vmem>>, vector<1x32xf32>
    %cst_14 = arith.constant dense<0.000000e+00> : vector<16xf32>
    %13 = vector.multi_reduction <add>, %1, %cst_14 [1] : vector<16x32xf32> to vector<16xf32>
    %14 = vector.shape_cast %13 : vector<16xf32> to vector<16x1xf32>
    %cst_15 = arith.constant 3.200000e+01 : f32
    %15 = vector.broadcast %cst_15 : f32 to vector<16x1xf32>
    %16 = arith.divf %14, %15 : vector<16x1xf32>
    %17 = vector.broadcast %16 : vector<16x1xf32> to vector<16x32xf32>
    %18 = arith.subf %1, %17 : vector<16x32xf32>
    %19 = arith.mulf %18, %18 : vector<16x32xf32>
    %cst_16 = arith.constant dense<0.000000e+00> : vector<16xf32>
    %20 = vector.multi_reduction <add>, %19, %cst_16 [1] : vector<16x32xf32> to vector<16xf32>
    %21 = vector.shape_cast %20 : vector<16xf32> to vector<16x1xf32>
    %cst_17 = arith.constant 3.200000e+01 : f32
    %22 = vector.broadcast %cst_17 : f32 to vector<16x1xf32>
    %23 = arith.divf %21, %22 : vector<16x1xf32>
    %cst_18 = arith.constant 9.99999997E-7 : f32
    %24 = vector.broadcast %cst_18 : f32 to vector<16x1xf32>
    %25 = arith.addf %23, %24 : vector<16x1xf32>
    %26 = math.rsqrt %25 : vector<16x1xf32>
    %27 = vector.broadcast %26 : vector<16x1xf32> to vector<16x32xf32>
    %28 = arith.mulf %18, %27 : vector<16x32xf32>
    %29 = vector.broadcast %11 : vector<1x32xf32> to vector<16x32xf32>
    %30 = arith.mulf %28, %29 : vector<16x32xf32>
    %31 = vector.broadcast %12 : vector<1x32xf32> to vector<16x32xf32>
    %32 = arith.addf %30, %31 : vector<16x32xf32>
    %33 = arith.truncf %32 : vector<16x32xf32> to vector<16x32xbf16>
    %c0_19 = arith.constant 0 : index
    %c0_20 = arith.constant 0 : index
    %34 = vector.load %arg6[%c0_19, %c0_20] : memref<32x96xbf16, #tpu.memory_space<vmem>>, vector<32x96xbf16>
    %cst_21 = arith.constant dense<0.000000e+00> : vector<16x96xf32>
    %35 = tpu.matmul %33, %34, %cst_21 {dimension_numbers = #tpu.dot_dimension_numbers<[1], [0], [0], [1], [0, 0, 1, 1], [], []>} : vector<16x32xbf16>, vector<32x96xbf16>, vector<16x96xf32> -> vector<16x96xf32>
    %36 = vector.extract_strided_slice %35 {offsets = [0, 0], sizes = [16, 32], strides = [1, 1]} : vector<16x96xf32> to vector<16x32xf32>
    %37 = vector.extract_strided_slice %35 {offsets = [0, 32], sizes = [16, 32], strides = [1, 1]} : vector<16x96xf32> to vector<16x32xf32>
    %38 = vector.extract_strided_slice %35 {offsets = [0, 64], sizes = [16, 32], strides = [1, 1]} : vector<16x96xf32> to vector<16x32xf32>
    %39 = vector.extract_strided_slice %36 {offsets = [0, 0], sizes = [16, 8], strides = [1, 1]} : vector<16x32xf32> to vector<16x8xf32>
    %40 = arith.truncf %39 : vector<16x8xf32> to vector<16x8xbf16>
    %41 = vector.extract_strided_slice %37 {offsets = [0, 0], sizes = [16, 8], strides = [1, 1]} : vector<16x32xf32> to vector<16x8xf32>
    %42 = arith.truncf %41 : vector<16x8xf32> to vector<16x8xbf16>
    %43 = vector.extract_strided_slice %38 {offsets = [0, 0], sizes = [16, 8], strides = [1, 1]} : vector<16x32xf32> to vector<16x8xf32>
    %44 = arith.truncf %43 : vector<16x8xf32> to vector<16x8xbf16>
    %cst_22 = arith.constant dense<0.000000e+00> : vector<16x16xf32>
    %45 = tpu.matmul %40, %42, %cst_22 {dimension_numbers = #tpu.dot_dimension_numbers<[1], [1], [0], [0], [0, 0, 1, 0], [], []>} : vector<16x8xbf16>, vector<16x8xbf16>, vector<16x16xf32> -> vector<16x16xf32>
    %cst_23 = arith.constant 0.353553385 : f32
    %46 = vector.broadcast %cst_23 : f32 to vector<16x16xf32>
    %47 = arith.mulf %45, %46 : vector<16x16xf32>
    %48 = vector.broadcast %10 : vector<1x16xf32> to vector<16x16xf32>
    %49 = arith.addf %47, %48 : vector<16x16xf32>
    %cst_24 = arith.constant dense<0xFF800000> : vector<16xf32>
    %50 = vector.multi_reduction <maximumf>, %49, %cst_24 [1] : vector<16x16xf32> to vector<16xf32>
    %51 = vector.shape_cast %50 : vector<16xf32> to vector<16x1xf32>
    %52 = vector.broadcast %51 : vector<16x1xf32> to vector<16x16xf32>
    %53 = arith.subf %49, %52 : vector<16x16xf32>
    %54 = math.exp %53 : vector<16x16xf32>
    %cst_25 = arith.constant dense<0.000000e+00> : vector<16xf32>
    %55 = vector.multi_reduction <add>, %54, %cst_25 [1] : vector<16x16xf32> to vector<16xf32>
    %56 = vector.shape_cast %55 : vector<16xf32> to vector<16x1xf32>
    %57 = tpu.reciprocal %56 {approx = true} : vector<16x1xf32> -> vector<16x1xf32>
    %58 = vector.broadcast %57 : vector<16x1xf32> to vector<16x16xf32>
    %59 = arith.mulf %54, %58 : vector<16x16xf32>
    %60 = arith.truncf %59 : vector<16x16xf32> to vector<16x16xbf16>
    %c0_26 = arith.constant 0 : index
    %c0_27 = arith.constant 0 : index
    %c0_28 = arith.constant 0 : index
    %c0_29 = arith.constant 0 : index
    %61 = vector.load %arg16[%c0_26, %c0_27, %c0_28, %c0_29] : memref<1x4x16x16xbf16, #tpu.memory_space<vmem>>, vector<1x1x16x16xbf16>
    %62 = vector.shape_cast %61 : vector<1x1x16x16xbf16> to vector<16x16xbf16>
    %63 = vector.shape_cast %60 : vector<16x16xbf16> to vector<1x1x16x16xbf16>
    tpu.vector_store %arg16[%c0_26, %c0_27, %c0_28, %c0_29], %63 {strides = array<i32>} : memref<1x4x16x16xbf16, #tpu.memory_space<vmem>>, vector<1x1x16x16xbf16>,
    %64 = arith.truncf %59 : vector<16x16xf32> to vector<16x16xbf16>
    %cst_30 = arith.constant dense<0.000000e+00> : vector<16x8xf32>
    %65 = tpu.matmul %64, %44, %cst_30 {dimension_numbers = #tpu.dot_dimension_numbers<[1], [0], [0], [1], [0, 0, 1, 1], [], []>} : vector<16x16xbf16>, vector<16x8xbf16>, vector<16x8xf32> -> vector<16x8xf32>
    %66 = arith.truncf %65 : vector<16x8xf32> to vector<16x8xbf16>
    %67 = vector.extract_strided_slice %36 {offsets = [0, 8], sizes = [16, 8], strides = [1, 1]} : vector<16x32xf32> to vector<16x8xf32>
    %68 = arith.truncf %67 : vector<16x8xf32> to vector<16x8xbf16>
    %69 = vector.extract_strided_slice %37 {offsets = [0, 8], sizes = [16, 8], strides = [1, 1]} : vector<16x32xf32> to vector<16x8xf32>
    %70 = arith.truncf %69 : vector<16x8xf32> to vector<16x8xbf16>
    %71 = vector.extract_strided_slice %38 {offsets = [0, 8], sizes = [16, 8], strides = [1, 1]} : vector<16x32xf32> to vector<16x8xf32>
    %72 = arith.truncf %71 : vector<16x8xf32> to vector<16x8xbf16>
    %cst_31 = arith.constant dense<0.000000e+00> : vector<16x16xf32>
    %73 = tpu.matmul %68, %70, %cst_31 {dimension_numbers = #tpu.dot_dimension_numbers<[1], [1], [0], [0], [0, 0, 1, 0], [], []>} : vector<16x8xbf16>, vector<16x8xbf16>, vector<16x16xf32> -> vector<16x16xf32>
    %cst_32 = arith.constant 0.353553385 : f32
    %74 = vector.broadcast %cst_32 : f32 to vector<16x16xf32>
    %75 = arith.mulf %73, %74 : vector<16x16xf32>
    %76 = vector.broadcast %10 : vector<1x16xf32> to vector<16x16xf32>
    %77 = arith.addf %75, %76 : vector<16x16xf32>
    %cst_33 = arith.constant dense<0xFF800000> : vector<16xf32>
    %78 = vector.multi_reduction <maximumf>, %77, %cst_33 [1] : vector<16x16xf32> to vector<16xf32>
    %79 = vector.shape_cast %78 : vector<16xf32> to vector<16x1xf32>
    %80 = vector.broadcast %79 : vector<16x1xf32> to vector<16x16xf32>
    %81 = arith.subf %77, %80 : vector<16x16xf32>
    %82 = math.exp %81 : vector<16x16xf32>
    %cst_34 = arith.constant dense<0.000000e+00> : vector<16xf32>
    %83 = vector.multi_reduction <add>, %82, %cst_34 [1] : vector<16x16xf32> to vector<16xf32>
    %84 = vector.shape_cast %83 : vector<16xf32> to vector<16x1xf32>
    %85 = tpu.reciprocal %84 {approx = true} : vector<16x1xf32> -> vector<16x1xf32>
    %86 = vector.broadcast %85 : vector<16x1xf32> to vector<16x16xf32>
    %87 = arith.mulf %82, %86 : vector<16x16xf32>
    %88 = arith.truncf %87 : vector<16x16xf32> to vector<16x16xbf16>
    %c0_35 = arith.constant 0 : index
    %c1 = arith.constant 1 : index
    %c0_36 = arith.constant 0 : index
    %c0_37 = arith.constant 0 : index
    %89 = vector.load %arg16[%c0_35, %c1, %c0_36, %c0_37] : memref<1x4x16x16xbf16, #tpu.memory_space<vmem>>, vector<1x1x16x16xbf16>
    %90 = vector.shape_cast %89 : vector<1x1x16x16xbf16> to vector<16x16xbf16>
    %91 = vector.shape_cast %88 : vector<16x16xbf16> to vector<1x1x16x16xbf16>
    tpu.vector_store %arg16[%c0_35, %c1, %c0_36, %c0_37], %91 {strides = array<i32>} : memref<1x4x16x16xbf16, #tpu.memory_space<vmem>>, vector<1x1x16x16xbf16>,
    %92 = arith.truncf %87 : vector<16x16xf32> to vector<16x16xbf16>
    %cst_38 = arith.constant dense<0.000000e+00> : vector<16x8xf32>
    %93 = tpu.matmul %92, %72, %cst_38 {dimension_numbers = #tpu.dot_dimension_numbers<[1], [0], [0], [1], [0, 0, 1, 1], [], []>} : vector<16x16xbf16>, vector<16x8xbf16>, vector<16x8xf32> -> vector<16x8xf32>
    %94 = arith.truncf %93 : vector<16x8xf32> to vector<16x8xbf16>
    %95 = vector.extract_strided_slice %36 {offsets = [0, 16], sizes = [16, 8], strides = [1, 1]} : vector<16x32xf32> to vector<16x8xf32>
    %96 = arith.truncf %95 : vector<16x8xf32> to vector<16x8xbf16>
    %97 = vector.extract_strided_slice %37 {offsets = [0, 16], sizes = [16, 8], strides = [1, 1]} : vector<16x32xf32> to vector<16x8xf32>
    %98 = arith.truncf %97 : vector<16x8xf32> to vector<16x8xbf16>
    %99 = vector.extract_strided_slice %38 {offsets = [0, 16], sizes = [16, 8], strides = [1, 1]} : vector<16x32xf32> to vector<16x8xf32>
    %100 = arith.truncf %99 : vector<16x8xf32> to vector<16x8xbf16>
    %cst_39 = arith.constant dense<0.000000e+00> : vector<16x16xf32>
    %101 = tpu.matmul %96, %98, %cst_39 {dimension_numbers = #tpu.dot_dimension_numbers<[1], [1], [0], [0], [0, 0, 1, 0], [], []>} : vector<16x8xbf16>, vector<16x8xbf16>, vector<16x16xf32> -> vector<16x16xf32>
    %cst_40 = arith.constant 0.353553385 : f32
    %102 = vector.broadcast %cst_40 : f32 to vector<16x16xf32>
    %103 = arith.mulf %101, %102 : vector<16x16xf32>
    %104 = vector.broadcast %10 : vector<1x16xf32> to vector<16x16xf32>
    %105 = arith.addf %103, %104 : vector<16x16xf32>
    %cst_41 = arith.constant dense<0xFF800000> : vector<16xf32>
    %106 = vector.multi_reduction <maximumf>, %105, %cst_41 [1] : vector<16x16xf32> to vector<16xf32>
    %107 = vector.shape_cast %106 : vector<16xf32> to vector<16x1xf32>
    %108 = vector.broadcast %107 : vector<16x1xf32> to vector<16x16xf32>
    %109 = arith.subf %105, %108 : vector<16x16xf32>
    %110 = math.exp %109 : vector<16x16xf32>
    %cst_42 = arith.constant dense<0.000000e+00> : vector<16xf32>
    %111 = vector.multi_reduction <add>, %110, %cst_42 [1] : vector<16x16xf32> to vector<16xf32>
    %112 = vector.shape_cast %111 : vector<16xf32> to vector<16x1xf32>
    %113 = tpu.reciprocal %112 {approx = true} : vector<16x1xf32> -> vector<16x1xf32>
    %114 = vector.broadcast %113 : vector<16x1xf32> to vector<16x16xf32>
    %115 = arith.mulf %110, %114 : vector<16x16xf32>
    %116 = arith.truncf %115 : vector<16x16xf32> to vector<16x16xbf16>
    %c0_43 = arith.constant 0 : index
    %c2 = arith.constant 2 : index
    %c0_44 = arith.constant 0 : index
    %c0_45 = arith.constant 0 : index
    %117 = vector.load %arg16[%c0_43, %c2, %c0_44, %c0_45] : memref<1x4x16x16xbf16, #tpu.memory_space<vmem>>, vector<1x1x16x16xbf16>
    %118 = vector.shape_cast %117 : vector<1x1x16x16xbf16> to vector<16x16xbf16>
    %119 = vector.shape_cast %116 : vector<16x16xbf16> to vector<1x1x16x16xbf16>
    tpu.vector_store %arg16[%c0_43, %c2, %c0_44, %c0_45], %119 {strides = array<i32>} : memref<1x4x16x16xbf16, #tpu.memory_space<vmem>>, vector<1x1x16x16xbf16>,
    %120 = arith.truncf %115 : vector<16x16xf32> to vector<16x16xbf16>
    %cst_46 = arith.constant dense<0.000000e+00> : vector<16x8xf32>
    %121 = tpu.matmul %120, %100, %cst_46 {dimension_numbers = #tpu.dot_dimension_numbers<[1], [0], [0], [1], [0, 0, 1, 1], [], []>} : vector<16x16xbf16>, vector<16x8xbf16>, vector<16x8xf32> -> vector<16x8xf32>
    %122 = arith.truncf %121 : vector<16x8xf32> to vector<16x8xbf16>
    %123 = vector.extract_strided_slice %36 {offsets = [0, 24], sizes = [16, 8], strides = [1, 1]} : vector<16x32xf32> to vector<16x8xf32>
    %124 = arith.truncf %123 : vector<16x8xf32> to vector<16x8xbf16>
    %125 = vector.extract_strided_slice %37 {offsets = [0, 24], sizes = [16, 8], strides = [1, 1]} : vector<16x32xf32> to vector<16x8xf32>
    %126 = arith.truncf %125 : vector<16x8xf32> to vector<16x8xbf16>
    %127 = vector.extract_strided_slice %38 {offsets = [0, 24], sizes = [16, 8], strides = [1, 1]} : vector<16x32xf32> to vector<16x8xf32>
    %128 = arith.truncf %127 : vector<16x8xf32> to vector<16x8xbf16>
    %cst_47 = arith.constant dense<0.000000e+00> : vector<16x16xf32>
    %129 = tpu.matmul %124, %126, %cst_47 {dimension_numbers = #tpu.dot_dimension_numbers<[1], [1], [0], [0], [0, 0, 1, 0], [], []>} : vector<16x8xbf16>, vector<16x8xbf16>, vector<16x16xf32> -> vector<16x16xf32>
    %cst_48 = arith.constant 0.353553385 : f32
    %130 = vector.broadcast %cst_48 : f32 to vector<16x16xf32>
    %131 = arith.mulf %129, %130 : vector<16x16xf32>
    %132 = vector.broadcast %10 : vector<1x16xf32> to vector<16x16xf32>
    %133 = arith.addf %131, %132 : vector<16x16xf32>
    %cst_49 = arith.constant dense<0xFF800000> : vector<16xf32>
    %134 = vector.multi_reduction <maximumf>, %133, %cst_49 [1] : vector<16x16xf32> to vector<16xf32>
    %135 = vector.shape_cast %134 : vector<16xf32> to vector<16x1xf32>
    %136 = vector.broadcast %135 : vector<16x1xf32> to vector<16x16xf32>
    %137 = arith.subf %133, %136 : vector<16x16xf32>
    %138 = math.exp %137 : vector<16x16xf32>
    %cst_50 = arith.constant dense<0.000000e+00> : vector<16xf32>
    %139 = vector.multi_reduction <add>, %138, %cst_50 [1] : vector<16x16xf32> to vector<16xf32>
    %140 = vector.shape_cast %139 : vector<16xf32> to vector<16x1xf32>
    %141 = tpu.reciprocal %140 {approx = true} : vector<16x1xf32> -> vector<16x1xf32>
    %142 = vector.broadcast %141 : vector<16x1xf32> to vector<16x16xf32>
    %143 = arith.mulf %138, %142 : vector<16x16xf32>
    %144 = arith.truncf %143 : vector<16x16xf32> to vector<16x16xbf16>
    %c0_51 = arith.constant 0 : index
    %c3 = arith.constant 3 : index
    %c0_52 = arith.constant 0 : index
    %c0_53 = arith.constant 0 : index
    %145 = vector.load %arg16[%c0_51, %c3, %c0_52, %c0_53] : memref<1x4x16x16xbf16, #tpu.memory_space<vmem>>, vector<1x1x16x16xbf16>
    %146 = vector.shape_cast %145 : vector<1x1x16x16xbf16> to vector<16x16xbf16>
    %147 = vector.shape_cast %144 : vector<16x16xbf16> to vector<1x1x16x16xbf16>
    tpu.vector_store %arg16[%c0_51, %c3, %c0_52, %c0_53], %147 {strides = array<i32>} : memref<1x4x16x16xbf16, #tpu.memory_space<vmem>>, vector<1x1x16x16xbf16>,
    %148 = arith.truncf %143 : vector<16x16xf32> to vector<16x16xbf16>
    %cst_54 = arith.constant dense<0.000000e+00> : vector<16x8xf32>
    %149 = tpu.matmul %148, %128, %cst_54 {dimension_numbers = #tpu.dot_dimension_numbers<[1], [0], [0], [1], [0, 0, 1, 1], [], []>} : vector<16x16xbf16>, vector<16x8xbf16>, vector<16x8xf32> -> vector<16x8xf32>
    %150 = arith.truncf %149 : vector<16x8xf32> to vector<16x8xbf16>
    %151 = tpu.concatenate %66, %94, %122, %150 in 1 : vector<16x8xbf16>, vector<16x8xbf16>, vector<16x8xbf16>, vector<16x8xbf16> -> vector<16x32xbf16>
    %c0_55 = arith.constant 0 : index
    %c0_56 = arith.constant 0 : index
    %152 = vector.load %arg7[%c0_55, %c0_56] : memref<32x32xbf16, #tpu.memory_space<vmem>>, vector<32x32xbf16>
    %cst_57 = arith.constant dense<0.000000e+00> : vector<16x32xf32>
    %153 = tpu.matmul %151, %152, %cst_57 {dimension_numbers = #tpu.dot_dimension_numbers<[1], [0], [0], [1], [0, 0, 1, 1], [], []>} : vector<16x32xbf16>, vector<32x32xbf16>, vector<16x32xf32> -> vector<16x32xf32>
    %c0_58 = arith.constant 0 : index
    %c0_59 = arith.constant 0 : index
    %154 = vector.load %arg8[%c0_58, %c0_59] : memref<1x32xf32, #tpu.memory_space<vmem>>, vector<1x32xf32>
    %155 = vector.broadcast %154 : vector<1x32xf32> to vector<16x32xf32>
    %156 = arith.addf %153, %155 : vector<16x32xf32>
    %157 = arith.addf %156, %1 : vector<16x32xf32>
    %158 = vector.broadcast %3 : vector<16x1xf32> to vector<16x32xf32>
    %159 = arith.mulf %157, %158 : vector<16x32xf32>
    %c0_60 = arith.constant 0 : index
    %c0_61 = arith.constant 0 : index
    %160 = vector.load %arg9[%c0_60, %c0_61] : memref<1x32xf32, #tpu.memory_space<vmem>>, vector<1x32xf32>
    %c0_62 = arith.constant 0 : index
    %c0_63 = arith.constant 0 : index
    %161 = vector.load %arg10[%c0_62, %c0_63] : memref<1x32xf32, #tpu.memory_space<vmem>>, vector<1x32xf32>
    %cst_64 = arith.constant dense<0.000000e+00> : vector<16xf32>
    %162 = vector.multi_reduction <add>, %159, %cst_64 [1] : vector<16x32xf32> to vector<16xf32>
    %163 = vector.shape_cast %162 : vector<16xf32> to vector<16x1xf32>
    %cst_65 = arith.constant 3.200000e+01 : f32
    %164 = vector.broadcast %cst_65 : f32 to vector<16x1xf32>
    %165 = arith.divf %163, %164 : vector<16x1xf32>
    %166 = vector.broadcast %165 : vector<16x1xf32> to vector<16x32xf32>
    %167 = arith.subf %159, %166 : vector<16x32xf32>
    %168 = arith.mulf %167, %167 : vector<16x32xf32>
    %cst_66 = arith.constant dense<0.000000e+00> : vector<16xf32>
    %169 = vector.multi_reduction <add>, %168, %cst_66 [1] : vector<16x32xf32> to vector<16xf32>
    %170 = vector.shape_cast %169 : vector<16xf32> to vector<16x1xf32>
    %cst_67 = arith.constant 3.200000e+01 : f32
    %171 = vector.broadcast %cst_67 : f32 to vector<16x1xf32>
    %172 = arith.divf %170, %171 : vector<16x1xf32>
    %cst_68 = arith.constant 9.99999997E-7 : f32
    %173 = vector.broadcast %cst_68 : f32 to vector<16x1xf32>
    %174 = arith.addf %172, %173 : vector<16x1xf32>
    %175 = math.rsqrt %174 : vector<16x1xf32>
    %176 = vector.broadcast %175 : vector<16x1xf32> to vector<16x32xf32>
    %177 = arith.mulf %167, %176 : vector<16x32xf32>
    %178 = vector.broadcast %160 : vector<1x32xf32> to vector<16x32xf32>
    %179 = arith.mulf %177, %178 : vector<16x32xf32>
    %180 = vector.broadcast %161 : vector<1x32xf32> to vector<16x32xf32>
    %181 = arith.addf %179, %180 : vector<16x32xf32>
    %182 = arith.truncf %181 : vector<16x32xf32> to vector<16x32xbf16>
    %c0_69 = arith.constant 0 : index
    %c0_70 = arith.constant 0 : index
    %183 = vector.load %arg11[%c0_69, %c0_70] : memref<32x64xbf16, #tpu.memory_space<vmem>>, vector<32x64xbf16>
    %cst_71 = arith.constant dense<0.000000e+00> : vector<16x64xf32>
    %184 = tpu.matmul %182, %183, %cst_71 {dimension_numbers = #tpu.dot_dimension_numbers<[1], [0], [0], [1], [0, 0, 1, 1], [], []>} : vector<16x32xbf16>, vector<32x64xbf16>, vector<16x64xf32> -> vector<16x64xf32>
    %c0_72 = arith.constant 0 : index
    %c0_73 = arith.constant 0 : index
    %185 = vector.load %arg12[%c0_72, %c0_73] : memref<1x64xf32, #tpu.memory_space<vmem>>, vector<1x64xf32>
    %186 = vector.broadcast %185 : vector<1x64xf32> to vector<16x64xf32>
    %187 = arith.addf %184, %186 : vector<16x64xf32>
    %cst_74 = arith.constant 5.000000e-01 : f32
    %188 = vector.broadcast %cst_74 : f32 to vector<16x64xf32>
    %189 = arith.mulf %188, %187 : vector<16x64xf32>
    %cst_75 = arith.constant 4.471500e-02 : f32
    %190 = vector.broadcast %cst_75 : f32 to vector<16x64xf32>
    %191 = arith.mulf %190, %187 : vector<16x64xf32>
    %192 = arith.mulf %191, %187 : vector<16x64xf32>
    %193 = arith.mulf %192, %187 : vector<16x64xf32>
    %194 = arith.addf %187, %193 : vector<16x64xf32>
    %cst_76 = arith.constant 0.797884583 : f32
    %195 = vector.broadcast %cst_76 : f32 to vector<16x64xf32>
    %196 = arith.mulf %195, %194 : vector<16x64xf32>
    %197 = math.tanh %196 : vector<16x64xf32>
    %cst_77 = arith.constant 1.000000e+00 : f32
    %198 = vector.broadcast %cst_77 : f32 to vector<16x64xf32>
    %199 = arith.addf %198, %197 : vector<16x64xf32>
    %200 = arith.mulf %189, %199 : vector<16x64xf32>
    %201 = arith.truncf %200 : vector<16x64xf32> to vector<16x64xbf16>
    %c0_78 = arith.constant 0 : index
    %c0_79 = arith.constant 0 : index
    %202 = vector.load %arg13[%c0_78, %c0_79] : memref<64x32xbf16, #tpu.memory_space<vmem>>, vector<64x32xbf16>
    %cst_80 = arith.constant dense<0.000000e+00> : vector<16x32xf32>
    %203 = tpu.matmul %201, %202, %cst_80 {dimension_numbers = #tpu.dot_dimension_numbers<[1], [0], [0], [1], [0, 0, 1, 1], [], []>} : vector<16x64xbf16>, vector<64x32xbf16>, vector<16x32xf32> -> vector<16x32xf32>
    %c0_81 = arith.constant 0 : index
    %c0_82 = arith.constant 0 : index
    %204 = vector.load %arg14[%c0_81, %c0_82] : memref<1x32xf32, #tpu.memory_space<vmem>>, vector<1x32xf32>
    %205 = vector.broadcast %204 : vector<1x32xf32> to vector<16x32xf32>
    %206 = arith.addf %203, %205 : vector<16x32xf32>
    %207 = arith.addf %206, %159 : vector<16x32xf32>
    %208 = vector.broadcast %3 : vector<16x1xf32> to vector<16x32xf32>
    %209 = arith.mulf %207, %208 : vector<16x32xf32>
    %c0_83 = arith.constant 0 : index
    %c0_84 = arith.constant 0 : index
    %c0_85 = arith.constant 0 : index
    %210 = vector.load %arg15[%c0_83, %c0_84, %c0_85] : memref<1x16x32xf32, #tpu.memory_space<vmem>>, vector<1x16x32xf32>
    %211 = vector.shape_cast %210 : vector<1x16x32xf32> to vector<16x32xf32>
    %212 = vector.shape_cast %209 : vector<16x32xf32> to vector<1x16x32xf32>
    tpu.vector_store %arg15[%c0_83, %c0_84, %c0_85], %212 {strides = array<i32>} : memref<1x16x32xf32, #tpu.memory_space<vmem>>, vector<1x16x32xf32>,
    return
  }
  func.func @transform_0(%arg0: i32) -> (i32, i32, i32) {
    %c0_i32 = arith.constant 0 : i32
    %c0_i32_0 = arith.constant 0 : i32
    %c0_i32_1 = arith.constant 0 : i32
    return %arg0, %c0_i32, %c0_i32_0 : i32, i32, i32
  }
  func.func @transform_1(%arg0: i32) -> (i32, i32, i32) {
    %c0_i32 = arith.constant 0 : i32
    %c0_i32_0 = arith.constant 0 : i32
    %c0_i32_1 = arith.constant 0 : i32
    return %arg0, %c0_i32, %c0_i32_0 : i32, i32, i32
  }
  func.func @transform_2(%arg0: i32) -> (i32, i32, i32) {
    %c0_i32 = arith.constant 0 : i32
    %c0_i32_0 = arith.constant 0 : i32
    %c0_i32_1 = arith.constant 0 : i32
    return %arg0, %c0_i32, %c0_i32_0 : i32, i32, i32
  }
  func.func @transform_3(%arg0: i32) -> (i32, i32) {
    %c0_i32 = arith.constant 0 : i32
    %c0_i32_0 = arith.constant 0 : i32
    %c0_i32_1 = arith.constant 0 : i32
    return %c0_i32, %c0_i32_0 : i32, i32
  }
  func.func @transform_4(%arg0: i32) -> (i32, i32) {
    %c0_i32 = arith.constant 0 : i32
    %c0_i32_0 = arith.constant 0 : i32
    %c0_i32_1 = arith.constant 0 : i32
    return %c0_i32, %c0_i32_0 : i32, i32
  }
  func.func @transform_5(%arg0: i32) -> (i32, i32) {
    %c0_i32 = arith.constant 0 : i32
    %c0_i32_0 = arith.constant 0 : i32
    %c0_i32_1 = arith.constant 0 : i32
    return %c0_i32, %c0_i32_0 : i32, i32
  }
  func.func @transform_6(%arg0: i32) -> (i32, i32) {
    %c0_i32 = arith.constant 0 : i32
    %c0_i32_0 = arith.constant 0 : i32
    %c0_i32_1 = arith.constant 0 : i32
    return %c0_i32, %c0_i32_0 : i32, i32
  }
  func.func @transform_7(%arg0: i32) -> (i32, i32) {
    %c0_i32 = arith.constant 0 : i32
    %c0_i32_0 = arith.constant 0 : i32
    %c0_i32_1 = arith.constant 0 : i32
    return %c0_i32, %c0_i32_0 : i32, i32
  }
  func.func @transform_8(%arg0: i32) -> (i32, i32) {
    %c0_i32 = arith.constant 0 : i32
    %c0_i32_0 = arith.constant 0 : i32
    %c0_i32_1 = arith.constant 0 : i32
    return %c0_i32, %c0_i32_0 : i32, i32
  }
  func.func @transform_9(%arg0: i32) -> (i32, i32) {
    %c0_i32 = arith.constant 0 : i32
    %c0_i32_0 = arith.constant 0 : i32
    %c0_i32_1 = arith.constant 0 : i32
    return %c0_i32, %c0_i32_0 : i32, i32
  }
  func.func @transform_10(%arg0: i32) -> (i32, i32) {
    %c0_i32 = arith.constant 0 : i32
    %c0_i32_0 = arith.constant 0 : i32
    %c0_i32_1 = arith.constant 0 : i32
    return %c0_i32, %c0_i32_0 : i32, i32
  }
  func.func @transform_11(%arg0: i32) -> (i32, i32) {
    %c0_i32 = arith.constant 0 : i32
    %c0_i32_0 = arith.constant 0 : i32
    %c0_i32_1 = arith.constant 0 : i32
    return %c0_i32, %c0_i32_0 : i32, i32
  }
  func.func @transform_12(%arg0: i32) -> (i32, i32) {
    %c0_i32 = arith.constant 0 : i32
    %c0_i32_0 = arith.constant 0 : i32
    %c0_i32_1 = arith.constant 0 : i32
    return %c0_i32, %c0_i32_0 : i32, i32
  }
  func.func @transform_13(%arg0: i32) -> (i32, i32) {
    %c0_i32 = arith.constant 0 : i32
    %c0_i32_0 = arith.constant 0 : i32
    %c0_i32_1 = arith.constant 0 : i32
    return %c0_i32, %c0_i32_0 : i32, i32
  }
  func.func @transform_14(%arg0: i32) -> (i32, i32, i32) {
    %c0_i32 = arith.constant 0 : i32
    %c0_i32_0 = arith.constant 0 : i32
    %c0_i32_1 = arith.constant 0 : i32
    return %arg0, %c0_i32, %c0_i32_0 : i32, i32, i32
  }
  func.func @transform_15(%arg0: i32) -> (i32, i32, i32, i32) {
    %c0_i32 = arith.constant 0 : i32
    %c0_i32_0 = arith.constant 0 : i32
    %c0_i32_1 = arith.constant 0 : i32
    %c0_i32_2 = arith.constant 0 : i32
    return %arg0, %c0_i32, %c0_i32_0, %c0_i32_1 : i32, i32, i32, i32
  }
}

</mosaic_0001>

<llo_original>
// kernel: encoder_layer_forward.1
$region0: #{encoder_layer_forward.1}
  #allocation0 [shape = 'u32[]', space=smem, size = 0x4, offset = 0x4, fixed_abs, tag = 'smem constant byte address 0x4 - core index']
  #allocation1 [shape = 'u32[144,128]{1,0:T(1,128)}', space=vmem, size = 0x12000, scoped, tag = 'internal scratch']
  %s0 = inlined_call_operand.vmem [shape: f32[2,16,32], index: 0, kind: input, shape index: {}]
  %s1 = inlined_call_operand.vmem [shape: f32[2,16,1], index: 1, kind: input, shape index: {}]
  %s2 = inlined_call_operand.vmem [shape: f32[2,1,16], index: 2, kind: input, shape index: {}]
  %s3 = inlined_call_operand.vmem [shape: f32[1,32], index: 3, kind: input, shape index: {}]
  %s4 = inlined_call_operand.vmem [shape: f32[1,32], index: 4, kind: input, shape index: {}]
  %s5 = inlined_call_operand.vmem [shape: bf16[32,96], index: 5, kind: input, shape index: {}]
  %s6 = inlined_call_operand.vmem [shape: bf16[32,32], index: 6, kind: input, shape index: {}]
  %s7 = inlined_call_operand.vmem [shape: f32[1,32], index: 7, kind: input, shape index: {}]
  %s8 = inlined_call_operand.vmem [shape: f32[1,32], index: 8, kind: input, shape index: {}]
  %s9 = inlined_call_operand.vmem [shape: f32[1,32], index: 9, kind: input, shape index: {}]
  %s10 = inlined_call_operand.vmem [shape: bf16[32,64], index: 10, kind: input, shape index: {}]
  %s11 = inlined_call_operand.vmem [shape: f32[1,64], index: 11, kind: input, shape index: {}]
  %s12 = inlined_call_operand.vmem [shape: bf16[64,32], index: 12, kind: input, shape index: {}]
  %s13 = inlined_call_operand.vmem [shape: f32[1,32], index: 13, kind: input, shape index: {}]
  %s14 = inlined_call_operand.hbm [shape: f32[2,16,32], index: 14, kind: output, shape index: {0}]
  %s15 = inlined_call_operand.hbm [shape: bf16[2,4,16,16], index: 15, kind: output, shape index: {1}]
  %16 = xla_tuple %s14, %s15
  %s17 = sld [smem:[#allocation0]]
  $region97: #{encoder_layer_forward.1} parent=0
    _
  %s19 = ssub.s32 1, %s17
  %s20 = scalar_select 0, %s19, %s17
  $region1: #{encoder_layer_forward.1} parent=0
    #allocation2 [shape = 'u8[16384]{0}', space=vmem, size = 0x4000, scoped, tag = 'output window, operand 0']
    #allocation3 [shape = 's32[2]{0}', space=sflag, size = 0x8, scoped, tag = 'scoped memory for encoder_layer_forward.1']
    #allocation4 [shape = 'u8[32768]{0}', space=vmem, size = 0x8000, scoped, tag = 'output window, operand 1']
    #allocation5 [shape = 's32[2]{0}', space=sflag, size = 0x8, scoped, tag = 'scoped memory for encoder_layer_forward.1']
    %21 = vsyncpa [#allocation3], 0
    %s22 = scalar_lea.sflag [#allocation3], 1
    %23 = vsyncpa %s22, 0
    %24 = vsyncpa [#allocation5], 0
    %s25 = scalar_lea.sflag [#allocation5], 1
    %26 = vsyncpa %s25, 0
    loop: start=0, step=1, limit=4
    $region2: #{encoder_layer_forward.1} parent=1 // loop_pre_header
      _
    $region3: #{encoder_layer_forward.1} parent=1 // loop_header
      %s28 = sphi 0, %s32
      %p29 = scmp.ge.s32.totalorder %s28, 4
      %s38 = sphi 0, %s40
      %s41 = sphi 0, %s38
      %s42 = sphi 0, %s41
      %s58 = sphi 0, %s42
      %s64 = sphi 0, %s66
      %s67 = sphi 0, %s64
      %s68 = sphi 0, %s67
      %s84 = sphi 0, %s68
      %s90 = sphi 0, %s92
      %s93 = sphi 0, %s90
      %s94 = sphi 0, %s93
      %s110 = sphi 0, %s94
      %s114 = sphi 0, %s114
      %s116 = sphi 0, %s114
      %s117 = sphi 0, %s116
      %s131 = sphi 0, %s117
      %s135 = sphi 0, %s135
      %s137 = sphi 0, %s135
      %s138 = sphi 0, %s137
      %s152 = sphi 0, %s138
      %s156 = sphi 0, %s156
      %s158 = sphi 0, %s156
      %s159 = sphi 0, %s158
      %s173 = sphi 0, %s159
      %s177 = sphi 0, %s177
      %s179 = sphi 0, %s177
      %s180 = sphi 0, %s179
      %s194 = sphi 0, %s180
      %s198 = sphi 0, %s198
      %s200 = sphi 0, %s198
      %s201 = sphi 0, %s200
      %s215 = sphi 0, %s201
      %s219 = sphi 0, %s219
      %s221 = sphi 0, %s219
      %s222 = sphi 0, %s221
      %s236 = sphi 0, %s222
      %s240 = sphi 0, %s240
      %s242 = sphi 0, %s240
      %s243 = sphi 0, %s242
      %s257 = sphi 0, %s243
      %s261 = sphi 0, %s261
      %s263 = sphi 0, %s261
      %s264 = sphi 0, %s263
      %s278 = sphi 0, %s264
      %s282 = sphi 0, %s282
      %s284 = sphi 0, %s282
      %s285 = sphi 0, %s284
      %s299 = sphi 0, %s285
      %s303 = sphi 0, %s303
      %s305 = sphi 0, %s303
      %s306 = sphi 0, %s305
      %s320 = sphi 0, %s306
      %s324 = sphi 0, %s324
      %s326 = sphi 0, %s324
      %s327 = sphi 0, %s326
      %s341 = sphi 0, %s327
      %s347 = sphi 0, %s349
      %s350 = sphi 0, %s347
      %s351 = sphi 0, %s350
      %s367 = sphi 0, %s351
      %s373 = sphi 0, %s375
      %s376 = sphi 0, %s373
      %s377 = sphi 0, %s376
      %s393 = sphi 0, %s377
    $region4: #{encoder_layer_forward.1} parent=1 // loop_header_branch
      %31 = sbr.rel (%p29) target = $region8
    $region5: #{encoder_layer_forward.1} parent=1 // loop_body
      %s33 = ssub.s32 %s28, 1
      %s34 = ssub.s32 %s28, 2
      %s35 = sadd.s32 %s28, 1
      %s36 = ssub.s32 %s28, %s35
      %p37 = scmp.eq.s32.totalorder %s36, 0
      %s39 = sadd.s32 %s38, 1
      %s40 = scalar_select %p37, %s38, %s39
      %p43 = pneg %p37
      %p44 = scmp.eq.s32.totalorder %s28, 1
      %p45 = por %p43, %p44
      %p46 = scmp.ne.s32.totalorder %s38, %s41
      %p47 = scmp.eq.s32.totalorder %s28, 0
      %p48 = por %p46, %p47
      %p49 = scmp.ne.s32.totalorder %s38, %s41
      %p50 = scmp.eq.s32.totalorder %s33, 1
      %p51 = por %p49, %p50
      %p52 = scmp.ne.s32.totalorder %s41, %s42
      %p53 = scmp.eq.s32.totalorder %s33, 0
      %p54 = por %p52, %p53
      %p55 = scmp.ne.s32.totalorder %s41, %s42
      %p56 = scmp.eq.s32.totalorder %s34, 1
      %p57 = por %p55, %p56
      %p59 = scmp.ne.s32.totalorder %s42, %s58
      %p60 = scmp.eq.s32.totalorder %s34, 0
      %p61 = por %p59, %p60
      %s62 = ssub.s32 %s28, %s35
      %p63 = scmp.eq.s32.totalorder %s62, 0
      %s65 = sadd.s32 %s64, 1
      %s66 = scalar_select %p63, %s64, %s65
      %p69 = pneg %p63
      %p70 = scmp.eq.s32.totalorder %s28, 1
      %p71 = por %p69, %p70
      %p72 = scmp.ne.s32.totalorder %s64, %s67
      %p73 = scmp.eq.s32.totalorder %s28, 0
      %p74 = por %p72, %p73
      %p75 = scmp.ne.s32.totalorder %s64, %s67
      %p76 = scmp.eq.s32.totalorder %s33, 1
      %p77 = por %p75, %p76
      %p78 = scmp.ne.s32.totalorder %s67, %s68
      %p79 = scmp.eq.s32.totalorder %s33, 0
      %p80 = por %p78, %p79
      %p81 = scmp.ne.s32.totalorder %s67, %s68
      %p82 = scmp.eq.s32.totalorder %s34, 1
      %p83 = por %p81, %p82
      %p85 = scmp.ne.s32.totalorder %s68, %s84
      %p86 = scmp.eq.s32.totalorder %s34, 0
      %p87 = por %p85, %p86
      %s88 = ssub.s32 %s28, %s35
      %p89 = scmp.eq.s32.totalorder %s88, 0
      %s91 = sadd.s32 %s90, 1
      %s92 = scalar_select %p89, %s90, %s91
      %p95 = pneg %p89
      %p96 = scmp.eq.s32.totalorder %s28, 1
      %p97 = por %p95, %p96
      %p98 = scmp.ne.s32.totalorder %s90, %s93
      %p99 = scmp.eq.s32.totalorder %s28, 0
      %p100 = por %p98, %p99
      %p101 = scmp.ne.s32.totalorder %s90, %s93
      %p102 = scmp.eq.s32.totalorder %s33, 1
      %p103 = por %p101, %p102
      %p104 = scmp.ne.s32.totalorder %s93, %s94
      %p105 = scmp.eq.s32.totalorder %s33, 0
      %p106 = por %p104, %p105
      %p107 = scmp.ne.s32.totalorder %s93, %s94
      %p108 = scmp.eq.s32.totalorder %s34, 1
      %p109 = por %p107, %p108
      %p111 = scmp.ne.s32.totalorder %s94, %s110
      %p112 = scmp.eq.s32.totalorder %s34, 0
      %p113 = por %p111, %p112
      %s115 = sadd.s32 %s114, 1
      %p118 = scmp.eq.s32.totalorder %s28, 1
      %p119 = scmp.ne.s32.totalorder %s114, %s116
      %p120 = scmp.eq.s32.totalorder %s28, 0
      %p121 = por %p119, %p120
      %p122 = scmp.ne.s32.totalorder %s114, %s116
      %p123 = scmp.eq.s32.totalorder %s33, 1
      %p124 = por %p122, %p123
      %p125 = scmp.ne.s32.totalorder %s116, %s117
      %p126 = scmp.eq.s32.totalorder %s33, 0
      %p127 = por %p125, %p126
      %p128 = scmp.ne.s32.totalorder %s116, %s117
      %p129 = scmp.eq.s32.totalorder %s34, 1
      %p130 = por %p128, %p129
      %p132 = scmp.ne.s32.totalorder %s117, %s131
      %p133 = scmp.eq.s32.totalorder %s34, 0
      %p134 = por %p132, %p133
      %s136 = sadd.s32 %s135, 1
      %p139 = scmp.eq.s32.totalorder %s28, 1
      %p140 = scmp.ne.s32.totalorder %s135, %s137
      %p141 = scmp.eq.s32.totalorder %s28, 0
      %p142 = por %p140, %p141
      %p143 = scmp.ne.s32.totalorder %s135, %s137
      %p144 = scmp.eq.s32.totalorder %s33, 1
      %p145 = por %p143, %p144
      %p146 = scmp.ne.s32.totalorder %s137, %s138
      %p147 = scmp.eq.s32.totalorder %s33, 0
      %p148 = por %p146, %p147
      %p149 = scmp.ne.s32.totalorder %s137, %s138
      %p150 = scmp.eq.s32.totalorder %s34, 1
      %p151 = por %p149, %p150
      %p153 = scmp.ne.s32.totalorder %s138, %s152
      %p154 = scmp.eq.s32.totalorder %s34, 0
      %p155 = por %p153, %p154
      %s157 = sadd.s32 %s156, 1
      %p160 = scmp.eq.s32.totalorder %s28, 1
      %p161 = scmp.ne.s32.totalorder %s156, %s158
      %p162 = scmp.eq.s32.totalorder %s28, 0
      %p163 = por %p161, %p162
      %p164 = scmp.ne.s32.totalorder %s156, %s158
      %p165 = scmp.eq.s32.totalorder %s33, 1
      %p166 = por %p164, %p165
      %p167 = scmp.ne.s32.totalorder %s158, %s159
      %p168 = scmp.eq.s32.totalorder %s33, 0
      %p169 = por %p167, %p168
      %p170 = scmp.ne.s32.totalorder %s158, %s159
      %p171 = scmp.eq.s32.totalorder %s34, 1
      %p172 = por %p170, %p171
      %p174 = scmp.ne.s32.totalorder %s159, %s173
      %p175 = scmp.eq.s32.totalorder %s34, 0
      %p176 = por %p174, %p175
      %s178 = sadd.s32 %s177, 1
      %p181 = scmp.eq.s32.totalorder %s28, 1
      %p182 = scmp.ne.s32.totalorder %s177, %s179
      %p183 = scmp.eq.s32.totalorder %s28, 0
      %p184 = por %p182, %p183
      %p185 = scmp.ne.s32.totalorder %s177, %s179
      %p186 = scmp.eq.s32.totalorder %s33, 1
      %p187 = por %p185, %p186
      %p188 = scmp.ne.s32.totalorder %s179, %s180
      %p189 = scmp.eq.s32.totalorder %s33, 0
      %p190 = por %p188, %p189
      %p191 = scmp.ne.s32.totalorder %s179, %s180
      %p192 = scmp.eq.s32.totalorder %s34, 1
      %p193 = por %p191, %p192
      %p195 = scmp.ne.s32.totalorder %s180, %s194
      %p196 = scmp.eq.s32.totalorder %s34, 0
      %p197 = por %p195, %p196
      %s199 = sadd.s32 %s198, 1
      %p202 = scmp.eq.s32.totalorder %s28, 1
      %p203 = scmp.ne.s32.totalorder %s198, %s200
      %p204 = scmp.eq.s32.totalorder %s28, 0
      %p205 = por %p203, %p204
      %p206 = scmp.ne.s32.totalorder %s198, %s200
      %p207 = scmp.eq.s32.totalorder %s33, 1
      %p208 = por %p206, %p207
      %p209 = scmp.ne.s32.totalorder %s200, %s201
      %p210 = scmp.eq.s32.totalorder %s33, 0
      %p211 = por %p209, %p210
      %p212 = scmp.ne.s32.totalorder %s200, %s201
      %p213 = scmp.eq.s32.totalorder %s34, 1
      %p214 = por %p212, %p213
      %p216 = scmp.ne.s32.totalorder %s201, %s215
      %p217 = scmp.eq.s32.totalorder %s34, 0
      %p218 = por %p216, %p217
      %s220 = sadd.s32 %s219, 1
      %p223 = scmp.eq.s32.totalorder %s28, 1
      %p224 = scmp.ne.s32.totalorder %s219, %s221
      %p225 = scmp.eq.s32.totalorder %s28, 0
      %p226 = por %p224, %p225
      %p227 = scmp.ne.s32.totalorder %s219, %s221
      %p228 = scmp.eq.s32.totalorder %s33, 1
      %p229 = por %p227, %p228
      %p230 = scmp.ne.s32.totalorder %s221, %s222
      %p231 = scmp.eq.s32.totalorder %s33, 0
      %p232 = por %p230, %p231
      %p233 = scmp.ne.s32.totalorder %s221, %s222
      %p234 = scmp.eq.s32.totalorder %s34, 1
      %p235 = por %p233, %p234
      %p237 = scmp.ne.s32.totalorder %s222, %s236
      %p238 = scmp.eq.s32.totalorder %s34, 0
      %p239 = por %p237, %p238
      %s241 = sadd.s32 %s240, 1
      %p244 = scmp.eq.s32.totalorder %s28, 1
      %p245 = scmp.ne.s32.totalorder %s240, %s242
      %p246 = scmp.eq.s32.totalorder %s28, 0
      %p247 = por %p245, %p246
      %p248 = scmp.ne.s32.totalorder %s240, %s242
      %p249 = scmp.eq.s32.totalorder %s33, 1
      %p250 = por %p248, %p249
      %p251 = scmp.ne.s32.totalorder %s242, %s243
      %p252 = scmp.eq.s32.totalorder %s33, 0
      %p253 = por %p251, %p252
      %p254 = scmp.ne.s32.totalorder %s242, %s243
      %p255 = scmp.eq.s32.totalorder %s34, 1
      %p256 = por %p254, %p255
      %p258 = scmp.ne.s32.totalorder %s243, %s257
      %p259 = scmp.eq.s32.totalorder %s34, 0
      %p260 = por %p258, %p259
      %s262 = sadd.s32 %s261, 1
      %p265 = scmp.eq.s32.totalorder %s28, 1
      %p266 = scmp.ne.s32.totalorder %s261, %s263
      %p267 = scmp.eq.s32.totalorder %s28, 0
      %p268 = por %p266, %p267
      %p269 = scmp.ne.s32.totalorder %s261, %s263
      %p270 = scmp.eq.s32.totalorder %s33, 1
      %p271 = por %p269, %p270
      %p272 = scmp.ne.s32.totalorder %s263, %s264
      %p273 = scmp.eq.s32.totalorder %s33, 0
      %p274 = por %p272, %p273
      %p275 = scmp.ne.s32.totalorder %s263, %s264
      %p276 = scmp.eq.s32.totalorder %s34, 1
      %p277 = por %p275, %p276
      %p279 = scmp.ne.s32.totalorder %s264, %s278
      %p280 = scmp.eq.s32.totalorder %s34, 0
      %p281 = por %p279, %p280
      %s283 = sadd.s32 %s282, 1
      %p286 = scmp.eq.s32.totalorder %s28, 1
      %p287 = scmp.ne.s32.totalorder %s282, %s284
      %p288 = scmp.eq.s32.totalorder %s28, 0
      %p289 = por %p287, %p288
      %p290 = scmp.ne.s32.totalorder %s282, %s284
      %p291 = scmp.eq.s32.totalorder %s33, 1
      %p292 = por %p290, %p291
      %p293 = scmp.ne.s32.totalorder %s284, %s285
      %p294 = scmp.eq.s32.totalorder %s33, 0
      %p295 = por %p293, %p294
      %p296 = scmp.ne.s32.totalorder %s284, %s285
      %p297 = scmp.eq.s32.totalorder %s34, 1
      %p298 = por %p296, %p297
      %p300 = scmp.ne.s32.totalorder %s285, %s299
      %p301 = scmp.eq.s32.totalorder %s34, 0
      %p302 = por %p300, %p301
      %s304 = sadd.s32 %s303, 1
      %p307 = scmp.eq.s32.totalorder %s28, 1
      %p308 = scmp.ne.s32.totalorder %s303, %s305
      %p309 = scmp.eq.s32.totalorder %s28, 0
      %p310 = por %p308, %p309
      %p311 = scmp.ne.s32.totalorder %s303, %s305
      %p312 = scmp.eq.s32.totalorder %s33, 1
      %p313 = por %p311, %p312
      %p314 = scmp.ne.s32.totalorder %s305, %s306
      %p315 = scmp.eq.s32.totalorder %s33, 0
      %p316 = por %p314, %p315
      %p317 = scmp.ne.s32.totalorder %s305, %s306
      %p318 = scmp.eq.s32.totalorder %s34, 1
      %p319 = por %p317, %p318
      %p321 = scmp.ne.s32.totalorder %s306, %s320
      %p322 = scmp.eq.s32.totalorder %s34, 0
      %p323 = por %p321, %p322
      %s325 = sadd.s32 %s324, 1
      %p328 = scmp.eq.s32.totalorder %s28, 1
      %p329 = scmp.ne.s32.totalorder %s324, %s326
      %p330 = scmp.eq.s32.totalorder %s28, 0
      %p331 = por %p329, %p330
      %p332 = scmp.ne.s32.totalorder %s324, %s326
      %p333 = scmp.eq.s32.totalorder %s33, 1
      %p334 = por %p332, %p333
      %p335 = scmp.ne.s32.totalorder %s326, %s327
      %p336 = scmp.eq.s32.totalorder %s33, 0
      %p337 = por %p335, %p336
      %p338 = scmp.ne.s32.totalorder %s326, %s327
      %p339 = scmp.eq.s32.totalorder %s34, 1
      %p340 = por %p338, %p339
      %p342 = scmp.ne.s32.totalorder %s327, %s341
      %p343 = scmp.eq.s32.totalorder %s34, 0
      %p344 = por %p342, %p343
      %s345 = ssub.s32 %s28, %s35
      %p346 = scmp.eq.s32.totalorder %s345, 0
      %s348 = sadd.s32 %s347, 1
      %s349 = scalar_select %p346, %s347, %s348
      %p352 = pneg %p346
      %p353 = scmp.eq.s32.totalorder %s28, 1
      %p354 = por %p352, %p353
      %p355 = scmp.ne.s32.totalorder %s347, %s350
      %p356 = scmp.eq.s32.totalorder %s28, 0
      %p357 = por %p355, %p356
      %p358 = scmp.ne.s32.totalorder %s347, %s350
      %p359 = scmp.eq.s32.totalorder %s33, 1
      %p360 = por %p358, %p359
      %p361 = scmp.ne.s32.totalorder %s350, %s351
      %p362 = scmp.eq.s32.totalorder %s33, 0
      %p363 = por %p361, %p362
      %p364 = scmp.ne.s32.totalorder %s350, %s351
      %p365 = scmp.eq.s32.totalorder %s34, 1
      %p366 = por %p364, %p365
      %p368 = scmp.ne.s32.totalorder %s351, %s367
      %p369 = scmp.eq.s32.totalorder %s34, 0
      %p370 = por %p368, %p369
      %s371 = ssub.s32 %s28, %s35
      %p372 = scmp.eq.s32.totalorder %s371, 0
      %s374 = sadd.s32 %s373, 1
      %s375 = scalar_select %p372, %s373, %s374
      %p378 = pneg %p372
      %p379 = scmp.eq.s32.totalorder %s28, 1
      %p380 = por %p378, %p379
      %p381 = scmp.ne.s32.totalorder %s373, %s376
      %p382 = scmp.eq.s32.totalorder %s28, 0
      %p383 = por %p381, %p382
      %p384 = scmp.ne.s32.totalorder %s373, %s376
      %p385 = scmp.eq.s32.totalorder %s33, 1
      %p386 = por %p384, %p385
      %p387 = scmp.ne.s32.totalorder %s376, %s377
      %p388 = scmp.eq.s32.totalorder %s33, 0
      %p389 = por %p387, %p388
      %p390 = scmp.ne.s32.totalorder %s376, %s377
      %p391 = scmp.eq.s32.totalorder %s34, 1
      %p392 = por %p390, %p391
      %p394 = scmp.ne.s32.totalorder %s377, %s393
      %p395 = scmp.eq.s32.totalorder %s34, 0
      %p396 = por %p394, %p395
      %p397 = scmp.le.s32.totalorder 1, %s28
      %p398 = scmp.lt.s32.totalorder %s28, 3
      %p399 = pnand %p397, %p398
      %p400 = pneg %p399
      // Predicated region
      $region9: #{encoder_layer_forward.1} parent=5 // pred_check
        _
      $region10: #{encoder_layer_forward.1} parent=5 // pred_check_branch
        %402 = sbr.rel (%p399) target = $region12
      $region11: #{encoder_layer_forward.1} parent=5 // pred_region
        %s403 = ssub.s32 %s28, 1
        // Predicated region
        $region13: #{encoder_layer_forward.1} parent=11 // pred_check
          %p404 = pneg %p127
        $region14: #{encoder_layer_forward.1} parent=11 // pred_check_branch
          %406 = sbr.rel (%p404) target = $region16
        $region15: #{encoder_layer_forward.1} parent=11 // pred_region
          _
        $region16: #{encoder_layer_forward.1} parent=11 // pred_fallthru
          _
        // Predicated region
        $region17: #{encoder_layer_forward.1} parent=11 // pred_check
          %p407 = pneg %p148
        $region18: #{encoder_layer_forward.1} parent=11 // pred_check_branch
          %409 = sbr.rel (%p407) target = $region20
        $region19: #{encoder_layer_forward.1} parent=11 // pred_region
          _
        $region20: #{encoder_layer_forward.1} parent=11 // pred_fallthru
          _
        // Predicated region
        $region21: #{encoder_layer_forward.1} parent=11 // pred_check
          %p410 = pneg %p169
        $region22: #{encoder_layer_forward.1} parent=11 // pred_check_branch
          %412 = sbr.rel (%p410) target = $region24
        $region23: #{encoder_layer_forward.1} parent=11 // pred_region
          _
        $region24: #{encoder_layer_forward.1} parent=11 // pred_fallthru
          _
        // Predicated region
        $region25: #{encoder_layer_forward.1} parent=11 // pred_check
          %p413 = pneg %p190
        $region26: #{encoder_layer_forward.1} parent=11 // pred_check_branch
          %415 = sbr.rel (%p413) target = $region28
        $region27: #{encoder_layer_forward.1} parent=11 // pred_region
          _
        $region28: #{encoder_layer_forward.1} parent=11 // pred_fallthru
          _
        // Predicated region
        $region29: #{encoder_layer_forward.1} parent=11 // pred_check
          %p416 = pneg %p211
        $region30: #{encoder_layer_forward.1} parent=11 // pred_check_branch
          %418 = sbr.rel (%p416) target = $region32
        $region31: #{encoder_layer_forward.1} parent=11 // pred_region
          _
        $region32: #{encoder_layer_forward.1} parent=11 // pred_fallthru
          _
        // Predicated region
        $region33: #{encoder_layer_forward.1} parent=11 // pred_check
          %p419 = pneg %p232
        $region34: #{encoder_layer_forward.1} parent=11 // pred_check_branch
          %421 = sbr.rel (%p419) target = $region36
        $region35: #{encoder_layer_forward.1} parent=11 // pred_region
          _
        $region36: #{encoder_layer_forward.1} parent=11 // pred_fallthru
          _
        // Predicated region
        $region37: #{encoder_layer_forward.1} parent=11 // pred_check
          %p422 = pneg %p253
        $region38: #{encoder_layer_forward.1} parent=11 // pred_check_branch
          %424 = sbr.rel (%p422) target = $region40
        $region39: #{encoder_layer_forward.1} parent=11 // pred_region
          _
        $region40: #{encoder_layer_forward.1} parent=11 // pred_fallthru
          _
        // Predicated region
        $region41: #{encoder_layer_forward.1} parent=11 // pred_check
          %p425 = pneg %p274
        $region42: #{encoder_layer_forward.1} parent=11 // pred_check_branch
          %427 = sbr.rel (%p425) target = $region44
        $region43: #{encoder_layer_forward.1} parent=11 // pred_region
          _
        $region44: #{encoder_layer_forward.1} parent=11 // pred_fallthru
          _
        // Predicated region
        $region45: #{encoder_layer_forward.1} parent=11 // pred_check
          %p428 = pneg %p295
        $region46: #{encoder_layer_forward.1} parent=11 // pred_check_branch
          %430 = sbr.rel (%p428) target = $region48
        $region47: #{encoder_layer_forward.1} parent=11 // pred_region
          _
        $region48: #{encoder_layer_forward.1} parent=11 // pred_fallthru
          _
        // Predicated region
        $region49: #{encoder_layer_forward.1} parent=11 // pred_check
          %p431 = pneg %p316
        $region50: #{encoder_layer_forward.1} parent=11 // pred_check_branch
          %433 = sbr.rel (%p431) target = $region52
        $region51: #{encoder_layer_forward.1} parent=11 // pred_region
          _
        $region52: #{encoder_layer_forward.1} parent=11 // pred_fallthru
          _
        // Predicated region
        $region53: #{encoder_layer_forward.1} parent=11 // pred_check
          %p434 = pneg %p337
        $region54: #{encoder_layer_forward.1} parent=11 // pred_check_branch
          %436 = sbr.rel (%p434) target = $region56
        $region55: #{encoder_layer_forward.1} parent=11 // pred_region
          _
        $region56: #{encoder_layer_forward.1} parent=11 // pred_fallthru
          _
      $region12: #{encoder_layer_forward.1} parent=5 // pred_fallthru
        _
      %p437 = scmp.lt.s32.totalorder %s28, 2
      // Predicated region
      $region57: #{encoder_layer_forward.1} parent=5 // pred_check
        %p438 = pneg %p437
      $region58: #{encoder_layer_forward.1} parent=5 // pred_check_branch
        %440 = sbr.rel (%p438) target = $region60
      $region59: #{encoder_layer_forward.1} parent=5 // pred_region
        // Predicated region
        $region61: #{encoder_layer_forward.1} parent=59 // pred_check
          %p441 = pneg %p48
        $region62: #{encoder_layer_forward.1} parent=59 // pred_check_branch
          %443 = sbr.rel (%p441) target = $region64
        $region63: #{encoder_layer_forward.1} parent=59 // pred_region
          %p444 = scmp.lt.s32.totalorder %s28, 1
          %s445 = scalar_select %p444, %s28, 1
          %s446 = smul.addr %s445, 2
          %s447 = smul.addr %s446, 8
          %s448 = scalar_lea.vmem %s0, %s447
        $region64: #{encoder_layer_forward.1} parent=59 // pred_fallthru
          _
        // Predicated region
        $region65: #{encoder_layer_forward.1} parent=59 // pred_check
          %p449 = pneg %p74
        $region66: #{encoder_layer_forward.1} parent=59 // pred_check_branch
          %451 = sbr.rel (%p449) target = $region68
        $region67: #{encoder_layer_forward.1} parent=59 // pred_region
          %p452 = scmp.lt.s32.totalorder %s28, 1
          %s453 = scalar_select %p452, %s28, 1
          %s454 = smul.addr %s453, 2
          %s455 = smul.addr %s454, 8
          %s456 = scalar_lea.vmem %s1, %s455
        $region68: #{encoder_layer_forward.1} parent=59 // pred_fallthru
          _
        // Predicated region
        $region69: #{encoder_layer_forward.1} parent=59 // pred_check
          %p457 = pneg %p100
        $region70: #{encoder_layer_forward.1} parent=59 // pred_check_branch
          %459 = sbr.rel (%p457) target = $region72
        $region71: #{encoder_layer_forward.1} parent=59 // pred_region
          %p460 = scmp.lt.s32.totalorder %s28, 1
          %s461 = scalar_select %p460, %s28, 1
          %s462 = scalar_lea.vmem %s2, %s461
        $region72: #{encoder_layer_forward.1} parent=59 // pred_fallthru
          _
      $region60: #{encoder_layer_forward.1} parent=5 // pred_fallthru
        _
      %p463 = scmp.le.s32.totalorder 1, %s28
      %p464 = scmp.lt.s32.totalorder %s28, 3
      %p465 = pnand %p463, %p464
      %p466 = pneg %p465
      // Predicated region
      $region73: #{encoder_layer_forward.1} parent=5 // pred_check
        _
      $region74: #{encoder_layer_forward.1} parent=5 // pred_check_branch
        %468 = sbr.rel (%p465) target = $region76
      $region75: #{encoder_layer_forward.1} parent=5 // pred_region
        %s469 = ssub.s32 %s28, 1
        %p470 = scmp.lt.s32.totalorder %s33, 1
        %s471 = scalar_select %p470, %s33, 1
        %s472 = smul.addr %s471, 2
        %s473 = smul.addr %s472, 8
        %s474 = scalar_lea.vmem %s0, %s473
        %p475 = pneg %p54
        %p476 = pneg %p51
        %p477 = scmp.lt.s32.totalorder %s33, 1
        %s478 = scalar_select %p477, %s33, 1
        %s479 = smul.addr %s478, 2
        %s480 = smul.addr %s479, 8
        %s481 = scalar_lea.vmem %s1, %s480
        %p482 = pneg %p80
        %p483 = pneg %p77
        %p484 = scmp.lt.s32.totalorder %s33, 1
        %s485 = scalar_select %p484, %s33, 1
        %s486 = scalar_lea.vmem %s2, %s485
        %p487 = pneg %p106
        %p488 = pneg %p103
        %p489 = pneg %p127
        %p490 = pneg %p124
        %p491 = pneg %p148
        %p492 = pneg %p145
        %p493 = pneg %p169
        %p494 = pneg %p166
        %p495 = pneg %p190
        %p496 = pneg %p187
        %p497 = pneg %p211
        %p498 = pneg %p208
        %p499 = pneg %p232
        %p500 = pneg %p229
        %p501 = pneg %p253
        %p502 = pneg %p250
        %p503 = pneg %p274
        %p504 = pneg %p271
        %p505 = pneg %p295
        %p506 = pneg %p292
        %p507 = pneg %p316
        %p508 = pneg %p313
        %p509 = pneg %p337
        %p510 = pneg %p334
        %p511 = pneg %p363
        %p512 = pneg %p360
        %s513 = sand.u32 %s350, 1
        %s514 = scalar_lea.sflag [#allocation3], %s513
        %s515 = sand.u32 %s350, 1
        %s516 = smul.addr %s515, 16
        %s517 = scalar_lea.vmem [#allocation2], %s516
        %p518 = pneg %p389
        %p519 = pneg %p386
        %s520 = sand.u32 %s376, 1
        %s521 = scalar_lea.sflag [#allocation5], %s520
        %s522 = sand.u32 %s376, 1
        %s523 = smul.addr %s522, 32
        %s524 = scalar_lea.vmem [#allocation4], %s523
        %p525 = scmp.lt.s32.totalorder %s33, 1
        %s526 = scalar_select %p525, %s33, 1
        %s527 = smul.addr %s526, 2
        %s528 = smul.addr %s527, 8
        %s529 = scalar_lea.vmem %s0, %s528
        %p530 = scmp.lt.s32.totalorder %s33, 1
        %s531 = scalar_select %p530, %s33, 1
        %s532 = smul.addr %s531, 2
        %s533 = smul.addr %s532, 8
        %s534 = scalar_lea.vmem %s1, %s533
        %p535 = scmp.lt.s32.totalorder %s33, 1
        %s536 = scalar_select %p535, %s33, 1
        %s537 = scalar_lea.vmem %s2, %s536
        %v539 = vld [vmem:[%s529] sm:$0xff]
        %v540 = vld [vmem:[%s529 + $0x8] sm:$0xff]
        %v541 = vld [vmem:[%s534] sm:$0xff]
        %v542 = vld [vmem:[%s534 + $0x8] sm:$0xff]
        %v543 = vld [vmem:[%s537] sm:$0x1]
        %vm544 = vcmp.gt.f32.partialorder %v543, 0.5
        %v545 = vsel %vm544, -1e+09, 0.0
        %v546 = vld [vmem:[%s3] sm:$0x1]
        %v547 = vld [vmem:[%s4] sm:$0x1]
        %vm548 = vcmask 261120
        %v549 = vsel %vm548, %v539, 0.0
        %550 = vadd.xlane.f32.xlu0 %v549
        %v551 = vpop.xlane.xlu0 %550
        %v552 = vsel %vm548, %v540, 0.0
        %553 = vadd.xlane.f32.xlu0 %v552
        %v554 = vpop.xlane.xlu0 %553
        %v555 = vrcp.pop 32.0
        %v556 = vmul.f32 %v551, %v555
        %v557 = vmul.f32 %v554, %v555
        %v558 = vsub.f32 %v539, %v556
        %v559 = vsub.f32 %v540, %v557
        %v560 = vmul.f32 %v558, %v558
        %v561 = vmul.f32 %v559, %v559
        %v562 = vsel %vm548, %v560, 0.0
        %563 = vadd.xlane.f32.xlu0 %v562
        %v564 = vpop.xlane.xlu0 %563
        %v565 = vsel %vm548, %v561, 0.0
        %566 = vadd.xlane.f32.xlu0 %v565
        %v567 = vpop.xlane.xlu0 %566
        %v568 = vmul.f32 %v564, %v555
        %v569 = vmul.f32 %v567, %v555
        %v570 = vadd.f32 %v568, 1e-06
        %v571 = vadd.f32 %v569, 1e-06
        %v572 = vrsqrt.pop %v570
        %v573 = vrsqrt.pop %v571
        %v574 = vmul.f32 %v558, %v572
        %v575 = vmul.f32 %v559, %v573
        %v577 = vlaneseq
        %v578 = vshrl.u32 %v577, 7
        %v579 = vsub.s32 0, %v578
        %v580 = vrot.slane %v546, %v579
        %v582 = vmul.f32 %v574, %v580
        %v583 = vmul.f32 %v575, %v580
        %v585 = vlaneseq
        %v586 = vshrl.u32 %v585, 7
        %v587 = vsub.s32 0, %v586
        %v588 = vrot.slane %v547, %v587
        %v590 = vadd.f32 %v582, %v588
        %v591 = vadd.f32 %v583, %v588
        %v592 = vpack.c.bf16 %v591, %v590
        %v593 = vld [vmem:[%s5] sm:$0xf]
        %v594 = vld [vmem:[%s5 + $0x4] sm:$0xf]
        %v595 = vld [vmem:[%s5 + $0x8] sm:$0xf]
        %v596 = vld [vmem:[%s5 + $0xc] sm:$0xf]
        %v601 = vunpack.c.l.b16 %v593
        %v602 = vunpack.c.l.b16 %v594
        %v603 = vunpack.c.l.b16 %v595
        %v604 = vunpack.c.l.b16 %v596
        %v605 = vpack.c.b16 %v602, %v601
        %v606 = vpack.c.b16 %v604, %v603
        %v610 = vsel %vm548, %v592, 0
        %612 = vmatprep.subr.bf16.mxu0 0
        %613 = vmatpush1.bf16.msra.mxu0 %v605
        %614 = vmatprep.subr.bf16.mxu0 0
        %615 = vmatpush1.bf16.msra.mxu0 %v606
        %616 = vmatprep.subr.bf16.mxu0 0
        %617 = vmatpush1.bf16.msra.mxu0 0
        %618 = vmatprep.subr.bf16.mxu0 0
        %619 = vmatpush1.bf16.msra.mxu0 0
        %620 = vmatprep.subr.bf16.mxu0 0
        %621 = vmatpush1.bf16.msra.mxu0 0
        %622 = vmatprep.subr.bf16.mxu0 0
        %623 = vmatpush1.bf16.msra.mxu0 0
        %624 = vmatprep.subr.bf16.mxu0 0
        %625 = vmatpush1.bf16.msra.mxu0 0
        %626 = vmatprep.subr.bf16.mxu0 0
        %627 = vmatpush1.bf16.msra.mxu0 0
        %628 = vmatprep.subr.bf16.mxu0 0
        %629 = vmatpush1.bf16.msra.mxu0 0
        %630 = vmatprep.subr.bf16.mxu0 0
        %631 = vmatpush1.bf16.msra.mxu0 0
        %632 = vmatprep.subr.bf16.mxu0 0
        %633 = vmatpush1.bf16.msra.mxu0 0
        %634 = vmatprep.subr.bf16.mxu0 0
        %635 = vmatpush1.bf16.msra.mxu0 0
        %636 = vmatprep.subr.bf16.mxu0 0
        %637 = vmatpush1.bf16.msra.mxu0 0
        %638 = vmatprep.subr.bf16.mxu0 0
        %639 = vmatpush1.bf16.msra.mxu0 0
        %640 = vmatprep.subr.bf16.mxu0 0
        %641 = vmatpush1.bf16.msra.mxu0 0
        %642 = vmatprep.subr.bf16.mxu0 0
        %643 = vmatpush1.bf16.msra.mxu0 0
        %644 = vmatprep.mubr.bf16.mxu0 0
        %645 = vmatmul.mubr.bf16.gmra.mrb[0].mxu0 %v610
        %v646 = vpop.f32.mrb[0].mxu0
        %v647 = vadd.f32 0.0, %v646
        %v648 = vpop.f32.mrb[0].mxu0
        %v649 = vpop.f32.mrb[0].mxu0
        %v650 = vadd.f32 0.0, %v649
        %v651 = vpop.f32.mrb[0].mxu0
        %652 = vdwg.mxu0
        %v653 = vpack.c.bf16 %v650, %v647
        %655 = vrot.lane.b32.xlu0 %v653, 96
        %v656 = vpop.permute.xlu0 %655
        %vm657 = vcmask 64512
        %v659 = vsel %vm657, %v653, 0
        %v662 = vsel %vm657, %v656, 0
        %664 = vmatprep.subr.bf16.mxu0 0
        %665 = vmatpush1.bf16.xpose.msra.mxu0 %v662
        %666 = vmatprep.subr.bf16.mxu0 0
        %667 = vmatpush1.bf16.xpose.msra.mxu0 0
        %668 = vmatprep.subr.bf16.mxu0 0
        %669 = vmatpush1.bf16.xpose.msra.mxu0 0
        %670 = vmatprep.subr.bf16.mxu0 0
        %671 = vmatpush1.bf16.xpose.msra.mxu0 0
        %672 = vmatprep.subr.bf16.mxu0 0
        %673 = vmatpush1.bf16.xpose.msra.mxu0 0
        %674 = vmatprep.subr.bf16.mxu0 0
        %675 = vmatpush1.bf16.xpose.msra.mxu0 0
        %676 = vmatprep.subr.bf16.mxu0 0
        %677 = vmatpush1.bf16.xpose.msra.mxu0 0
        %678 = vmatprep.subr.bf16.mxu0 0
        %679 = vmatpush1.bf16.xpose.msra.mxu0 0
        %680 = vmatprep.subr.bf16.mxu0 0
        %681 = vmatpush1.bf16.xpose.msra.mxu0 0
        %682 = vmatprep.subr.bf16.mxu0 0
        %683 = vmatpush1.bf16.xpose.msra.mxu0 0
        %684 = vmatprep.subr.bf16.mxu0 0
        %685 = vmatpush1.bf16.xpose.msra.mxu0 0
        %686 = vmatprep.subr.bf16.mxu0 0
        %687 = vmatpush1.bf16.xpose.msra.mxu0 0
        %688 = vmatprep.subr.bf16.mxu0 0
        %689 = vmatpush1.bf16.xpose.msra.mxu0 0
        %690 = vmatprep.subr.bf16.mxu0 0
        %691 = vmatpush1.bf16.xpose.msra.mxu0 0
        %692 = vmatprep.subr.bf16.mxu0 0
        %693 = vmatpush1.bf16.xpose.msra.mxu0 0
        %694 = vmatprep.subr.bf16.mxu0 0
        %695 = vmatpush1.bf16.xpose.msra.mxu0 0
        %696 = vmatprep.mubr.bf16.mxu0 0
        %697 = vmatmul.mubr.bf16.gmra.mrb[0].mxu0 %v659
        %v698 = vpop.f32.mrb[0].mxu0
        %v699 = vadd.f32 0.0, %v698
        %v700 = vpop.f32.mrb[0].mxu0
        %v701 = vpop.f32.mrb[0].mxu0
        %v702 = vadd.f32 0.0, %v701
        %v703 = vpop.f32.mrb[0].mxu0
        %704 = vdwg.mxu0
        %v705 = vmul.f32 %v699, 0.35355338
        %v706 = vmul.f32 %v702, 0.35355338
        %v708 = vlaneseq
        %v709 = vshrl.u32 %v708, 7
        %v710 = vsub.s32 0, %v709
        %v711 = vrot.slane %v545, %v710
        %v713 = vadd.f32 %v705, %v711
        %v714 = vadd.f32 %v706, %v711
        %vm715 = vcmask 130048
        %v716 = vsel %vm715, %v713, -inf
        %717 = vmax.xlane.f32.xlu0 %v716
        %v718 = vpop.xlane.xlu0 %717
        %v719 = vsel %vm715, %v714, -inf
        %720 = vmax.xlane.f32.xlu0 %v719
        %v721 = vpop.xlane.xlu0 %720
        %v722 = vsub.f32 %v713, %v718
        %v723 = vsub.f32 %v714, %v721
        %v724 = vmul.f32 %v722, 1.442695
        %v725 = vpow.pop %v724
        %v726 = vmul.f32 %v723, 1.442695
        %v727 = vpow.pop %v726
        %v728 = vsel %vm715, %v725, 0.0
        %729 = vadd.xlane.f32.xlu0 %v728
        %v730 = vpop.xlane.xlu0 %729
        %v731 = vsel %vm715, %v727, 0.0
        %732 = vadd.xlane.f32.xlu0 %v731
        %v733 = vpop.xlane.xlu0 %732
        %v734 = vrcp.pop %v730
        %v735 = vrcp.pop %v733
        %v736 = vmul.f32 %v725, %v734
        %v737 = vmul.f32 %v727, %v735
        %v738 = vpack.c.bf16 %v737, %v736
        %v740 = vunpack.c.l.b16 %v738
        %v741 = vunpack.c.h.b16 %v738
        %v742 = vpack.c.b16 %v740, %v740
        %v743 = vpack.c.b16 %v741, %v741
        %vm746 = vcmask 125952
        %747 = vst.msk [vmem:[%s524] sm:$0xf] %vm746, %v742
        %748 = vst.msk [vmem:[%s524 + $0x4] sm:$0xf] %vm746, %v743
        %749 = vrot.lane.b32.xlu0 %v653, 64
        %v750 = vpop.permute.xlu0 %749
        %v753 = vsel %vm715, %v738, 0
        %755 = vmatprep.subr.bf16.mxu0 0
        %756 = vmatpush1.bf16.msra.mxu0 %v750
        %757 = vmatprep.subr.bf16.mxu0 0
        %758 = vmatpush1.bf16.msra.mxu0 0
        %759 = vmatprep.subr.bf16.mxu0 0
        %760 = vmatpush1.bf16.msra.mxu0 0
        %761 = vmatprep.subr.bf16.mxu0 0
        %762 = vmatpush1.bf16.msra.mxu0 0
        %763 = vmatprep.subr.bf16.mxu0 0
        %764 = vmatpush1.bf16.msra.mxu0 0
        %765 = vmatprep.subr.bf16.mxu0 0
        %766 = vmatpush1.bf16.msra.mxu0 0
        %767 = vmatprep.subr.bf16.mxu0 0
        %768 = vmatpush1.bf16.msra.mxu0 0
        %769 = vmatprep.subr.bf16.mxu0 0
        %770 = vmatpush1.bf16.msra.mxu0 0
        %771 = vmatprep.subr.bf16.mxu0 0
        %772 = vmatpush1.bf16.msra.mxu0 0
        %773 = vmatprep.subr.bf16.mxu0 0
        %774 = vmatpush1.bf16.msra.mxu0 0
        %775 = vmatprep.subr.bf16.mxu0 0
        %776 = vmatpush1.bf16.msra.mxu0 0
        %777 = vmatprep.subr.bf16.mxu0 0
        %778 = vmatpush1.bf16.msra.mxu0 0
        %779 = vmatprep.subr.bf16.mxu0 0
        %780 = vmatpush1.bf16.msra.mxu0 0
        %781 = vmatprep.subr.bf16.mxu0 0
        %782 = vmatpush1.bf16.msra.mxu0 0
        %783 = vmatprep.subr.bf16.mxu0 0
        %784 = vmatpush1.bf16.msra.mxu0 0
        %785 = vmatprep.subr.bf16.mxu0 0
        %786 = vmatpush1.bf16.msra.mxu0 0
        %787 = vmatprep.mubr.bf16.mxu0 0
        %788 = vmatmul.mubr.bf16.gmra.mrb[0].mxu0 %v753
        %v789 = vpop.f32.mrb[0].mxu0
        %v790 = vadd.f32 0.0, %v789
        %v791 = vpop.f32.mrb[0].mxu0
        %v792 = vpop.f32.mrb[0].mxu0
        %v793 = vadd.f32 0.0, %v792
        %v794 = vpop.f32.mrb[0].mxu0
        %795 = vdwg.mxu0
        %v796 = vpack.c.bf16 %v793, %v790
        %797 = vrot.lane.b32.xlu0 %v653, 120
        %v798 = vpop.permute.xlu0 %797
        %799 = vrot.lane.b32.xlu0 %v653, 88
        %v800 = vpop.permute.xlu0 %799
        %v802 = vsel %vm657, %v798, 0
        %v805 = vsel %vm657, %v800, 0
        %807 = vmatprep.subr.bf16.mxu0 0
        %808 = vmatpush1.bf16.xpose.msra.mxu0 %v805
        %809 = vmatprep.subr.bf16.mxu0 0
        %810 = vmatpush1.bf16.xpose.msra.mxu0 0
        %811 = vmatprep.subr.bf16.mxu0 0
        %812 = vmatpush1.bf16.xpose.msra.mxu0 0
        %813 = vmatprep.subr.bf16.mxu0 0
        %814 = vmatpush1.bf16.xpose.msra.mxu0 0
        %815 = vmatprep.subr.bf16.mxu0 0
        %816 = vmatpush1.bf16.xpose.msra.mxu0 0
        %817 = vmatprep.subr.bf16.mxu0 0
        %818 = vmatpush1.bf16.xpose.msra.mxu0 0
        %819 = vmatprep.subr.bf16.mxu0 0
        %820 = vmatpush1.bf16.xpose.msra.mxu0 0
        %821 = vmatprep.subr.bf16.mxu0 0
        %822 = vmatpush1.bf16.xpose.msra.mxu0 0
        %823 = vmatprep.subr.bf16.mxu0 0
        %824 = vmatpush1.bf16.xpose.msra.mxu0 0
        %825 = vmatprep.subr.bf16.mxu0 0
        %826 = vmatpush1.bf16.xpose.msra.mxu0 0
        %827 = vmatprep.subr.bf16.mxu0 0
        %828 = vmatpush1.bf16.xpose.msra.mxu0 0
        %829 = vmatprep.subr.bf16.mxu0 0
        %830 = vmatpush1.bf16.xpose.msra.mxu0 0
        %831 = vmatprep.subr.bf16.mxu0 0
        %832 = vmatpush1.bf16.xpose.msra.mxu0 0
        %833 = vmatprep.subr.bf16.mxu0 0
        %834 = vmatpush1.bf16.xpose.msra.mxu0 0
        %835 = vmatprep.subr.bf16.mxu0 0
        %836 = vmatpush1.bf16.xpose.msra.mxu0 0
        %837 = vmatprep.subr.bf16.mxu0 0
        %838 = vmatpush1.bf16.xpose.msra.mxu0 0
        %839 = vmatprep.mubr.bf16.mxu0 0
        %840 = vmatmul.mubr.bf16.gmra.mrb[0].mxu0 %v802
        %v841 = vpop.f32.mrb[0].mxu0
        %v842 = vadd.f32 0.0, %v841
        %v843 = vpop.f32.mrb[0].mxu0
        %v844 = vpop.f32.mrb[0].mxu0
        %v845 = vadd.f32 0.0, %v844
        %v846 = vpop.f32.mrb[0].mxu0
        %847 = vdwg.mxu0
        %v848 = vmul.f32 %v842, 0.35355338
        %v849 = vmul.f32 %v845, 0.35355338
        %v850 = vadd.f32 %v848, %v711
        %v851 = vadd.f32 %v849, %v711
        %v852 = vsel %vm715, %v850, -inf
        %853 = vmax.xlane.f32.xlu0 %v852
        %v854 = vpop.xlane.xlu0 %853
        %v855 = vsel %vm715, %v851, -inf
        %856 = vmax.xlane.f32.xlu0 %v855
        %v857 = vpop.xlane.xlu0 %856
        %v858 = vsub.f32 %v850, %v854
        %v859 = vsub.f32 %v851, %v857
        %v860 = vmul.f32 %v858, 1.442695
        %v861 = vpow.pop %v860
        %v862 = vmul.f32 %v859, 1.442695
        %v863 = vpow.pop %v862
        %v864 = vsel %vm715, %v861, 0.0
        %865 = vadd.xlane.f32.xlu0 %v864
        %v866 = vpop.xlane.xlu0 %865
        %v867 = vsel %vm715, %v863, 0.0
        %868 = vadd.xlane.f32.xlu0 %v867
        %v869 = vpop.xlane.xlu0 %868
        %v870 = vrcp.pop %v866
        %v871 = vrcp.pop %v869
        %v872 = vmul.f32 %v861, %v870
        %v873 = vmul.f32 %v863, %v871
        %v874 = vpack.c.bf16 %v873, %v872
        %v876 = vunpack.c.l.b16 %v874
        %v877 = vunpack.c.h.b16 %v874
        %v878 = vpack.c.b16 %v876, %v876
        %v879 = vpack.c.b16 %v877, %v877
        %s882 = scalar_lea.vmem %s524, 8 [#allocation4]
        %883 = vst.msk [vmem:[%s882] sm:$0xf] %vm746, %v878
        %884 = vst.msk [vmem:[%s882 + $0x4] sm:$0xf] %vm746, %v879
        %885 = vrot.lane.b32.xlu0 %v653, 56
        %v886 = vpop.permute.xlu0 %885
        %v889 = vsel %vm715, %v874, 0
        %891 = vmatprep.subr.bf16.mxu0 0
        %892 = vmatpush1.bf16.msra.mxu0 %v886
        %893 = vmatprep.subr.bf16.mxu0 0
        %894 = vmatpush1.bf16.msra.mxu0 0
        %895 = vmatprep.subr.bf16.mxu0 0
        %896 = vmatpush1.bf16.msra.mxu0 0
        %897 = vmatprep.subr.bf16.mxu0 0
        %898 = vmatpush1.bf16.msra.mxu0 0
        %899 = vmatprep.subr.bf16.mxu0 0
        %900 = vmatpush1.bf16.msra.mxu0 0
        %901 = vmatprep.subr.bf16.mxu0 0
        %902 = vmatpush1.bf16.msra.mxu0 0
        %903 = vmatprep.subr.bf16.mxu0 0
        %904 = vmatpush1.bf16.msra.mxu0 0
        %905 = vmatprep.subr.bf16.mxu0 0
        %906 = vmatpush1.bf16.msra.mxu0 0
        %907 = vmatprep.subr.bf16.mxu0 0
        %908 = vmatpush1.bf16.msra.mxu0 0
        %909 = vmatprep.subr.bf16.mxu0 0
        %910 = vmatpush1.bf16.msra.mxu0 0
        %911 = vmatprep.subr.bf16.mxu0 0
        %912 = vmatpush1.bf16.msra.mxu0 0
        %913 = vmatprep.subr.bf16.mxu0 0
        %914 = vmatpush1.bf16.msra.mxu0 0
        %915 = vmatprep.subr.bf16.mxu0 0
        %916 = vmatpush1.bf16.msra.mxu0 0
        %917 = vmatprep.subr.bf16.mxu0 0
        %918 = vmatpush1.bf16.msra.mxu0 0
        %919 = vmatprep.subr.bf16.mxu0 0
        %920 = vmatpush1.bf16.msra.mxu0 0
        %921 = vmatprep.subr.bf16.mxu0 0
        %922 = vmatpush1.bf16.msra.mxu0 0
        %923 = vmatprep.mubr.bf16.mxu0 0
        %924 = vmatmul.mubr.bf16.gmra.mrb[0].mxu0 %v889
        %v925 = vpop.f32.mrb[0].mxu0
        %v926 = vadd.f32 0.0, %v925
        %v927 = vpop.f32.mrb[0].mxu0
        %v928 = vpop.f32.mrb[0].mxu0
        %v929 = vadd.f32 0.0, %v928
        %v930 = vpop.f32.mrb[0].mxu0
        %931 = vdwg.mxu0
        %v932 = vpack.c.bf16 %v929, %v926
        %933 = vrot.lane.b32.xlu0 %v653, 112
        %v934 = vpop.permute.xlu0 %933
        %935 = vrot.lane.b32.xlu0 %v653, 80
        %v936 = vpop.permute.xlu0 %935
        %v938 = vsel %vm657, %v934, 0
        %v941 = vsel %vm657, %v936, 0
        %943 = vmatprep.subr.bf16.mxu0 0
        %944 = vmatpush1.bf16.xpose.msra.mxu0 %v941
        %945 = vmatprep.subr.bf16.mxu0 0
        %946 = vmatpush1.bf16.xpose.msra.mxu0 0
        %947 = vmatprep.subr.bf16.mxu0 0
        %948 = vmatpush1.bf16.xpose.msra.mxu0 0
        %949 = vmatprep.subr.bf16.mxu0 0
        %950 = vmatpush1.bf16.xpose.msra.mxu0 0
        %951 = vmatprep.subr.bf16.mxu0 0
        %952 = vmatpush1.bf16.xpose.msra.mxu0 0
        %953 = vmatprep.subr.bf16.mxu0 0
        %954 = vmatpush1.bf16.xpose.msra.mxu0 0
        %955 = vmatprep.subr.bf16.mxu0 0
        %956 = vmatpush1.bf16.xpose.msra.mxu0 0
        %957 = vmatprep.subr.bf16.mxu0 0
        %958 = vmatpush1.bf16.xpose.msra.mxu0 0
        %959 = vmatprep.subr.bf16.mxu0 0
        %960 = vmatpush1.bf16.xpose.msra.mxu0 0
        %961 = vmatprep.subr.bf16.mxu0 0
        %962 = vmatpush1.bf16.xpose.msra.mxu0 0
        %963 = vmatprep.subr.bf16.mxu0 0
        %964 = vmatpush1.bf16.xpose.msra.mxu0 0
        %965 = vmatprep.subr.bf16.mxu0 0
        %966 = vmatpush1.bf16.xpose.msra.mxu0 0
        %967 = vmatprep.subr.bf16.mxu0 0
        %968 = vmatpush1.bf16.xpose.msra.mxu0 0
        %969 = vmatprep.subr.bf16.mxu0 0
        %970 = vmatpush1.bf16.xpose.msra.mxu0 0
        %971 = vmatprep.subr.bf16.mxu0 0
        %972 = vmatpush1.bf16.xpose.msra.mxu0 0
        %973 = vmatprep.subr.bf16.mxu0 0
        %974 = vmatpush1.bf16.xpose.msra.mxu0 0
        %975 = vmatprep.mubr.bf16.mxu0 0
        %976 = vmatmul.mubr.bf16.gmra.mrb[0].mxu0 %v938
        %v977 = vpop.f32.mrb[0].mxu0
        %v978 = vadd.f32 0.0, %v977
        %v979 = vpop.f32.mrb[0].mxu0
        %v980 = vpop.f32.mrb[0].mxu0
        %v981 = vadd.f32 0.0, %v980
        %v982 = vpop.f32.mrb[0].mxu0
        %983 = vdwg.mxu0
        %v984 = vmul.f32 %v978, 0.35355338
        %v985 = vmul.f32 %v981, 0.35355338
        %v986 = vadd.f32 %v984, %v711
        %v987 = vadd.f32 %v985, %v711
        %v988 = vsel %vm715, %v986, -inf
        %989 = vmax.xlane.f32.xlu0 %v988
        %v990 = vpop.xlane.xlu0 %989
        %v991 = vsel %vm715, %v987, -inf
        %992 = vmax.xlane.f32.xlu0 %v991
        %v993 = vpop.xlane.xlu0 %992
        %v994 = vsub.f32 %v986, %v990
        %v995 = vsub.f32 %v987, %v993
        %v996 = vmul.f32 %v994, 1.442695
        %v997 = vpow.pop %v996
        %v998 = vmul.f32 %v995, 1.442695
        %v999 = vpow.pop %v998
        %v1000 = vsel %vm715, %v997, 0.0
        %1001 = vadd.xlane.f32.xlu0 %v1000
        %v1002 = vpop.xlane.xlu0 %1001
        %v1003 = vsel %vm715, %v999, 0.0
        %1004 = vadd.xlane.f32.xlu0 %v1003
        %v1005 = vpop.xlane.xlu0 %1004
        %v1006 = vrcp.pop %v1002
        %v1007 = vrcp.pop %v1005
        %v1008 = vmul.f32 %v997, %v1006
        %v1009 = vmul.f32 %v999, %v1007
        %v1010 = vpack.c.bf16 %v1009, %v1008
        %v1012 = vunpack.c.l.b16 %v1010
        %v1013 = vunpack.c.h.b16 %v1010
        %v1014 = vpack.c.b16 %v1012, %v1012
        %v1015 = vpack.c.b16 %v1013, %v1013
        %s1018 = scalar_lea.vmem %s524, 16 [#allocation4]
        %1019 = vst.msk [vmem:[%s1018] sm:$0xf] %vm746, %v1014
        %1020 = vst.msk [vmem:[%s1018 + $0x4] sm:$0xf] %vm746, %v1015
        %1021 = vrot.lane.b32.xlu0 %v653, 48
        %v1022 = vpop.permute.xlu0 %1021
        %v1025 = vsel %vm715, %v1010, 0
        %1027 = vmatprep.subr.bf16.mxu0 0
        %1028 = vmatpush1.bf16.msra.mxu0 %v1022
        %1029 = vmatprep.subr.bf16.mxu0 0
        %1030 = vmatpush1.bf16.msra.mxu0 0
        %1031 = vmatprep.subr.bf16.mxu0 0
        %1032 = vmatpush1.bf16.msra.mxu0 0
        %1033 = vmatprep.subr.bf16.mxu0 0
        %1034 = vmatpush1.bf16.msra.mxu0 0
        %1035 = vmatprep.subr.bf16.mxu0 0
        %1036 = vmatpush1.bf16.msra.mxu0 0
        %1037 = vmatprep.subr.bf16.mxu0 0
        %1038 = vmatpush1.bf16.msra.mxu0 0
        %1039 = vmatprep.subr.bf16.mxu0 0
        %1040 = vmatpush1.bf16.msra.mxu0 0
        %1041 = vmatprep.subr.bf16.mxu0 0
        %1042 = vmatpush1.bf16.msra.mxu0 0
        %1043 = vmatprep.subr.bf16.mxu0 0
        %1044 = vmatpush1.bf16.msra.mxu0 0
        %1045 = vmatprep.subr.bf16.mxu0 0
        %1046 = vmatpush1.bf16.msra.mxu0 0
        %1047 = vmatprep.subr.bf16.mxu0 0
        %1048 = vmatpush1.bf16.msra.mxu0 0
        %1049 = vmatprep.subr.bf16.mxu0 0
        %1050 = vmatpush1.bf16.msra.mxu0 0
        %1051 = vmatprep.subr.bf16.mxu0 0
        %1052 = vmatpush1.bf16.msra.mxu0 0
        %1053 = vmatprep.subr.bf16.mxu0 0
        %1054 = vmatpush1.bf16.msra.mxu0 0
        %1055 = vmatprep.subr.bf16.mxu0 0
        %1056 = vmatpush1.bf16.msra.mxu0 0
        %1057 = vmatprep.subr.bf16.mxu0 0
        %1058 = vmatpush1.bf16.msra.mxu0 0
        %1059 = vmatprep.mubr.bf16.mxu0 0
        %1060 = vmatmul.mubr.bf16.gmra.mrb[0].mxu0 %v1025
        %v1061 = vpop.f32.mrb[0].mxu0
        %v1062 = vadd.f32 0.0, %v1061
        %v1063 = vpop.f32.mrb[0].mxu0
        %v1064 = vpop.f32.mrb[0].mxu0
        %v1065 = vadd.f32 0.0, %v1064
        %v1066 = vpop.f32.mrb[0].mxu0
        %1067 = vdwg.mxu0
        %v1068 = vpack.c.bf16 %v1065, %v1062
        %1069 = vrot.lane.b32.xlu0 %v653, 104
        %v1070 = vpop.permute.xlu0 %1069
        %1071 = vrot.lane.b32.xlu0 %v653, 72
        %v1072 = vpop.permute.xlu0 %1071
        %v1074 = vsel %vm657, %v1070, 0
        %v1077 = vsel %vm657, %v1072, 0
        %1079 = vmatprep.subr.bf16.mxu0 0
        %1080 = vmatpush1.bf16.xpose.msra.mxu0 %v1077
        %1081 = vmatprep.subr.bf16.mxu0 0
        %1082 = vmatpush1.bf16.xpose.msra.mxu0 0
        %1083 = vmatprep.subr.bf16.mxu0 0
        %1084 = vmatpush1.bf16.xpose.msra.mxu0 0
        %1085 = vmatprep.subr.bf16.mxu0 0
        %1086 = vmatpush1.bf16.xpose.msra.mxu0 0
        %1087 = vmatprep.subr.bf16.mxu0 0
        %1088 = vmatpush1.bf16.xpose.msra.mxu0 0
        %1089 = vmatprep.subr.bf16.mxu0 0
        %1090 = vmatpush1.bf16.xpose.msra.mxu0 0
        %1091 = vmatprep.subr.bf16.mxu0 0
        %1092 = vmatpush1.bf16.xpose.msra.mxu0 0
        %1093 = vmatprep.subr.bf16.mxu0 0
        %1094 = vmatpush1.bf16.xpose.msra.mxu0 0
        %1095 = vmatprep.subr.bf16.mxu0 0
        %1096 = vmatpush1.bf16.xpose.msra.mxu0 0
        %1097 = vmatprep.subr.bf16.mxu0 0
        %1098 = vmatpush1.bf16.xpose.msra.mxu0 0
        %1099 = vmatprep.subr.bf16.mxu0 0
        %1100 = vmatpush1.bf16.xpose.msra.mxu0 0
        %1101 = vmatprep.subr.bf16.mxu0 0
        %1102 = vmatpush1.bf16.xpose.msra.mxu0 0
        %1103 = vmatprep.subr.bf16.mxu0 0
        %1104 = vmatpush1.bf16.xpose.msra.mxu0 0
        %1105 = vmatprep.subr.bf16.mxu0 0
        %1106 = vmatpush1.bf16.xpose.msra.mxu0 0
        %1107 = vmatprep.subr.bf16.mxu0 0
        %1108 = vmatpush1.bf16.xpose.msra.mxu0 0
        %1109 = vmatprep.subr.bf16.mxu0 0
        %1110 = vmatpush1.bf16.xpose.msra.mxu0 0
        %1111 = vmatprep.mubr.bf16.mxu0 0
        %1112 = vmatmul.mubr.bf16.gmra.mrb[0].mxu0 %v1074
        %v1113 = vpop.f32.mrb[0].mxu0
        %v1114 = vadd.f32 0.0, %v1113
        %v1115 = vpop.f32.mrb[0].mxu0
        %v1116 = vpop.f32.mrb[0].mxu0
        %v1117 = vadd.f32 0.0, %v1116
        %v1118 = vpop.f32.mrb[0].mxu0
        %1119 = vdwg.mxu0
        %v1120 = vmul.f32 %v1114, 0.35355338
        %v1121 = vmul.f32 %v1117, 0.35355338
        %v1122 = vadd.f32 %v1120, %v711
        %v1123 = vadd.f32 %v1121, %v711
        %v1124 = vsel %vm715, %v1122, -inf
        %1125 = vmax.xlane.f32.xlu0 %v1124
        %v1126 = vpop.xlane.xlu0 %1125
        %v1127 = vsel %vm715, %v1123, -inf
        %1128 = vmax.xlane.f32.xlu0 %v1127
        %v1129 = vpop.xlane.xlu0 %1128
        %v1130 = vsub.f32 %v1122, %v1126
        %v1131 = vsub.f32 %v1123, %v1129
        %v1132 = vmul.f32 %v1130, 1.442695
        %v1133 = vpow.pop %v1132
        %v1134 = vmul.f32 %v1131, 1.442695
        %v1135 = vpow.pop %v1134
        %v1136 = vsel %vm715, %v1133, 0.0
        %1137 = vadd.xlane.f32.xlu0 %v1136
        %v1138 = vpop.xlane.xlu0 %1137
        %v1139 = vsel %vm715, %v1135, 0.0
        %1140 = vadd.xlane.f32.xlu0 %v1139
        %v1141 = vpop.xlane.xlu0 %1140
        %v1142 = vrcp.pop %v1138
        %v1143 = vrcp.pop %v1141
        %v1144 = vmul.f32 %v1133, %v1142
        %v1145 = vmul.f32 %v1135, %v1143
        %v1146 = vpack.c.bf16 %v1145, %v1144
        %v1148 = vunpack.c.l.b16 %v1146
        %v1149 = vunpack.c.h.b16 %v1146
        %v1150 = vpack.c.b16 %v1148, %v1148
        %v1151 = vpack.c.b16 %v1149, %v1149
        %s1154 = scalar_lea.vmem %s524, 24 [#allocation4]
        %1155 = vst.msk [vmem:[%s1154] sm:$0xf] %vm746, %v1150
        %1156 = vst.msk [vmem:[%s1154 + $0x4] sm:$0xf] %vm746, %v1151
        %1157 = vrot.lane.b32.xlu0 %v653, 40
        %v1158 = vpop.permute.xlu0 %1157
        %v1161 = vsel %vm715, %v1146, 0
        %1163 = vmatprep.subr.bf16.mxu0 0
        %1164 = vmatpush1.bf16.msra.mxu0 %v1158
        %1165 = vmatprep.subr.bf16.mxu0 0
        %1166 = vmatpush1.bf16.msra.mxu0 0
        %1167 = vmatprep.subr.bf16.mxu0 0
        %1168 = vmatpush1.bf16.msra.mxu0 0
        %1169 = vmatprep.subr.bf16.mxu0 0
        %1170 = vmatpush1.bf16.msra.mxu0 0
        %1171 = vmatprep.subr.bf16.mxu0 0
        %1172 = vmatpush1.bf16.msra.mxu0 0
        %1173 = vmatprep.subr.bf16.mxu0 0
        %1174 = vmatpush1.bf16.msra.mxu0 0
        %1175 = vmatprep.subr.bf16.mxu0 0
        %1176 = vmatpush1.bf16.msra.mxu0 0
        %1177 = vmatprep.subr.bf16.mxu0 0
        %1178 = vmatpush1.bf16.msra.mxu0 0
        %1179 = vmatprep.subr.bf16.mxu0 0
        %1180 = vmatpush1.bf16.msra.mxu0 0
        %1181 = vmatprep.subr.bf16.mxu0 0
        %1182 = vmatpush1.bf16.msra.mxu0 0
        %1183 = vmatprep.subr.bf16.mxu0 0
        %1184 = vmatpush1.bf16.msra.mxu0 0
        %1185 = vmatprep.subr.bf16.mxu0 0
        %1186 = vmatpush1.bf16.msra.mxu0 0
        %1187 = vmatprep.subr.bf16.mxu0 0
        %1188 = vmatpush1.bf16.msra.mxu0 0
        %1189 = vmatprep.subr.bf16.mxu0 0
        %1190 = vmatpush1.bf16.msra.mxu0 0
        %1191 = vmatprep.subr.bf16.mxu0 0
        %1192 = vmatpush1.bf16.msra.mxu0 0
        %1193 = vmatprep.subr.bf16.mxu0 0
        %1194 = vmatpush1.bf16.msra.mxu0 0
        %1195 = vmatprep.mubr.bf16.mxu0 0
        %1196 = vmatmul.mubr.bf16.gmra.mrb[0].mxu0 %v1161
        %v1197 = vpop.f32.mrb[0].mxu0
        %v1198 = vadd.f32 0.0, %v1197
        %v1199 = vpop.f32.mrb[0].mxu0
        %v1200 = vpop.f32.mrb[0].mxu0
        %v1201 = vadd.f32 0.0, %v1200
        %v1202 = vpop.f32.mrb[0].mxu0
        %1203 = vdwg.mxu0
        %v1204 = vpack.c.bf16 %v1201, %v1198
        %1206 = vrot.lane.b32.xlu0 %v932, 8
        %v1207 = vpop.permute.xlu0 %1206
        %1209 = vrot.lane.b32.xlu0 %v1068, 16
        %v1210 = vpop.permute.xlu0 %1209
        %1212 = vrot.lane.b32.xlu0 %v1204, 24
        %v1213 = vpop.permute.xlu0 %1212
        %v1216 = vsel %vm657, %v796, %v1207
        %v1218 = vsel %vm715, %v1216, %v1210
        %vm1219 = vcmask 195584
        %v1221 = vsel %vm1219, %v1218, %v1213
        %v1222 = vld [vmem:[%s6] sm:$0xf]
        %v1223 = vld [vmem:[%s6 + $0x4] sm:$0xf]
        %v1224 = vld [vmem:[%s6 + $0x8] sm:$0xf]
        %v1225 = vld [vmem:[%s6 + $0xc] sm:$0xf]
        %v1226 = vld [vmem:[%s7] sm:$0x1]
        %v1228 = vlaneseq
        %v1229 = vshrl.u32 %v1228, 7
        %v1230 = vsub.s32 0, %v1229
        %v1231 = vrot.slane %v1226, %v1230
        %v1237 = vunpack.c.l.b16 %v1222
        %v1238 = vunpack.c.l.b16 %v1223
        %v1239 = vunpack.c.l.b16 %v1224
        %v1240 = vunpack.c.l.b16 %v1225
        %v1241 = vpack.c.b16 %v1238, %v1237
        %v1242 = vpack.c.b16 %v1240, %v1239
        %v1245 = vsel %vm548, %v1221, 0
        %1247 = vmatprep.subr.bf16.mxu0 0
        %1248 = vmatpush1.bf16.msra.mxu0 %v1241
        %1249 = vmatprep.subr.bf16.mxu0 0
        %1250 = vmatpush1.bf16.msra.mxu0 %v1242
        %1251 = vmatprep.subr.bf16.mxu0 0
        %1252 = vmatpush1.bf16.msra.mxu0 0
        %1253 = vmatprep.subr.bf16.mxu0 0
        %1254 = vmatpush1.bf16.msra.mxu0 0
        %1255 = vmatprep.subr.bf16.mxu0 0
        %1256 = vmatpush1.bf16.msra.mxu0 0
        %1257 = vmatprep.subr.bf16.mxu0 0
        %1258 = vmatpush1.bf16.msra.mxu0 0
        %1259 = vmatprep.subr.bf16.mxu0 0
        %1260 = vmatpush1.bf16.msra.mxu0 0
        %1261 = vmatprep.subr.bf16.mxu0 0
        %1262 = vmatpush1.bf16.msra.mxu0 0
        %1263 = vmatprep.subr.bf16.mxu0 0
        %1264 = vmatpush1.bf16.msra.mxu0 0
        %1265 = vmatprep.subr.bf16.mxu0 0
        %1266 = vmatpush1.bf16.msra.mxu0 0
        %1267 = vmatprep.subr.bf16.mxu0 0
        %1268 = vmatpush1.bf16.msra.mxu0 0
        %1269 = vmatprep.subr.bf16.mxu0 0
        %1270 = vmatpush1.bf16.msra.mxu0 0
        %1271 = vmatprep.subr.bf16.mxu0 0
        %1272 = vmatpush1.bf16.msra.mxu0 0
        %1273 = vmatprep.subr.bf16.mxu0 0
        %1274 = vmatpush1.bf16.msra.mxu0 0
        %1275 = vmatprep.subr.bf16.mxu0 0
        %1276 = vmatpush1.bf16.msra.mxu0 0
        %1277 = vmatprep.subr.bf16.mxu0 0
        %1278 = vmatpush1.bf16.msra.mxu0 0
        %1279 = vmatprep.mubr.bf16.mxu0 0
        %1280 = vmatmul.mubr.bf16.gmra.mrb[0].mxu0 %v1245
        %v1281 = vpop.f32.mrb[0].mxu0
        %v1282 = vadd.f32 %v1231, %v1281
        %v1283 = vpop.f32.mrb[0].mxu0
        %v1284 = vpop.f32.mrb[0].mxu0
        %v1285 = vadd.f32 %v1231, %v1284
        %v1286 = vpop.f32.mrb[0].mxu0
        %1287 = vdwg.mxu0
        %v1288 = vadd.f32 %v1282, %v539
        %v1289 = vadd.f32 %v1285, %v540
        %1291 = vset.pattern.permute.xlu0 0
        %1292 = vperm.xlu0 %1291, %v541
        %v1293 = vpop.permute.xlu0 %1292
        %1296 = vset.pattern.permute.xlu0 0
        %1297 = vperm.xlu0 %1296, %v542
        %v1298 = vpop.permute.xlu0 %1297
        %v1300 = vmul.f32 %v1288, %v1293
        %v1301 = vmul.f32 %v1289, %v1298
        %v1302 = vld [vmem:[%s8] sm:$0x1]
        %v1303 = vld [vmem:[%s9] sm:$0x1]
        %v1304 = vsel %vm548, %v1300, 0.0
        %1305 = vadd.xlane.f32.xlu0 %v1304
        %v1306 = vpop.xlane.xlu0 %1305
        %v1307 = vsel %vm548, %v1301, 0.0
        %1308 = vadd.xlane.f32.xlu0 %v1307
        %v1309 = vpop.xlane.xlu0 %1308
        %v1310 = vmul.f32 %v1306, %v555
        %v1311 = vmul.f32 %v1309, %v555
        %v1312 = vsub.f32 %v1300, %v1310
        %v1313 = vsub.f32 %v1301, %v1311
        %v1314 = vmul.f32 %v1312, %v1312
        %v1315 = vmul.f32 %v1313, %v1313
        %v1316 = vsel %vm548, %v1314, 0.0
        %1317 = vadd.xlane.f32.xlu0 %v1316
        %v1318 = vpop.xlane.xlu0 %1317
        %v1319 = vsel %vm548, %v1315, 0.0
        %1320 = vadd.xlane.f32.xlu0 %v1319
        %v1321 = vpop.xlane.xlu0 %1320
        %v1322 = vmul.f32 %v1318, %v555
        %v1323 = vmul.f32 %v1321, %v555
        %v1324 = vadd.f32 %v1322, 1e-06
        %v1325 = vadd.f32 %v1323, 1e-06
        %v1326 = vrsqrt.pop %v1324
        %v1327 = vrsqrt.pop %v1325
        %v1328 = vmul.f32 %v1312, %v1326
        %v1329 = vmul.f32 %v1313, %v1327
        %v1331 = vlaneseq
        %v1332 = vshrl.u32 %v1331, 7
        %v1333 = vsub.s32 0, %v1332
        %v1334 = vrot.slane %v1302, %v1333
        %v1336 = vmul.f32 %v1328, %v1334
        %v1337 = vmul.f32 %v1329, %v1334
        %v1339 = vlaneseq
        %v1340 = vshrl.u32 %v1339, 7
        %v1341 = vsub.s32 0, %v1340
        %v1342 = vrot.slane %v1303, %v1341
        %v1344 = vadd.f32 %v1336, %v1342
        %v1345 = vadd.f32 %v1337, %v1342
        %v1346 = vpack.c.bf16 %v1345, %v1344
        %v1347 = vld [vmem:[%s10] sm:$0xf]
        %v1348 = vld [vmem:[%s10 + $0x4] sm:$0xf]
        %v1349 = vld [vmem:[%s10 + $0x8] sm:$0xf]
        %v1350 = vld [vmem:[%s10 + $0xc] sm:$0xf]
        %v1351 = vld [vmem:[%s11] sm:$0x1]
        %v1353 = vlaneseq
        %v1354 = vshrl.u32 %v1353, 7
        %v1355 = vsub.s32 0, %v1354
        %v1356 = vrot.slane %v1351, %v1355
        %v1362 = vunpack.c.l.b16 %v1347
        %v1363 = vunpack.c.l.b16 %v1348
        %v1364 = vunpack.c.l.b16 %v1349
        %v1365 = vunpack.c.l.b16 %v1350
        %v1366 = vpack.c.b16 %v1363, %v1362
        %v1367 = vpack.c.b16 %v1365, %v1364
        %v1371 = vsel %vm548, %v1346, 0
        %1373 = vmatprep.subr.bf16.mxu0 0
        %1374 = vmatpush1.bf16.msra.mxu0 %v1366
        %1375 = vmatprep.subr.bf16.mxu0 0
        %1376 = vmatpush1.bf16.msra.mxu0 %v1367
        %1377 = vmatprep.subr.bf16.mxu0 0
        %1378 = vmatpush1.bf16.msra.mxu0 0
        %1379 = vmatprep.subr.bf16.mxu0 0
        %1380 = vmatpush1.bf16.msra.mxu0 0
        %1381 = vmatprep.subr.bf16.mxu0 0
        %1382 = vmatpush1.bf16.msra.mxu0 0
        %1383 = vmatprep.subr.bf16.mxu0 0
        %1384 = vmatpush1.bf16.msra.mxu0 0
        %1385 = vmatprep.subr.bf16.mxu0 0
        %1386 = vmatpush1.bf16.msra.mxu0 0
        %1387 = vmatprep.subr.bf16.mxu0 0
        %1388 = vmatpush1.bf16.msra.mxu0 0
        %1389 = vmatprep.subr.bf16.mxu0 0
        %1390 = vmatpush1.bf16.msra.mxu0 0
        %1391 = vmatprep.subr.bf16.mxu0 0
        %1392 = vmatpush1.bf16.msra.mxu0 0
        %1393 = vmatprep.subr.bf16.mxu0 0
        %1394 = vmatpush1.bf16.msra.mxu0 0
        %1395 = vmatprep.subr.bf16.mxu0 0
        %1396 = vmatpush1.bf16.msra.mxu0 0
        %1397 = vmatprep.subr.bf16.mxu0 0
        %1398 = vmatpush1.bf16.msra.mxu0 0
        %1399 = vmatprep.subr.bf16.mxu0 0
        %1400 = vmatpush1.bf16.msra.mxu0 0
        %1401 = vmatprep.subr.bf16.mxu0 0
        %1402 = vmatpush1.bf16.msra.mxu0 0
        %1403 = vmatprep.subr.bf16.mxu0 0
        %1404 = vmatpush1.bf16.msra.mxu0 0
        %1405 = vmatprep.mubr.bf16.mxu0 0
        %1406 = vmatmul.mubr.bf16.gmra.mrb[0].mxu0 %v1371
        %v1407 = vpop.f32.mrb[0].mxu0
        %v1408 = vadd.f32 %v1356, %v1407
        %v1409 = vpop.f32.mrb[0].mxu0
        %v1410 = vpop.f32.mrb[0].mxu0
        %v1411 = vadd.f32 %v1356, %v1410
        %v1412 = vpop.f32.mrb[0].mxu0
        %1413 = vdwg.mxu0
        %v1414 = vmul.f32 %v1408, 0.5
        %v1415 = vmul.f32 %v1411, 0.5
        %v1416 = vmul.f32 %v1408, 0.044715
        %v1417 = vmul.f32 %v1411, 0.044715
        %v1418 = vmul.f32 %v1416, %v1408
        %v1419 = vmul.f32 %v1417, %v1411
        %v1420 = vmul.f32 %v1418, %v1408
        %v1421 = vmul.f32 %v1419, %v1411
        %v1422 = vadd.f32 %v1408, %v1420
        %v1423 = vadd.f32 %v1411, %v1421
        %v1424 = vmul.f32 %v1422, 0.7978846
        %v1425 = vmul.f32 %v1423, 0.7978846
        %v1426 = vtanh.pop %v1424
        %v1427 = vtanh.pop %v1425
        %v1428 = vadd.f32 %v1426, 1.0
        %v1429 = vadd.f32 %v1427, 1.0
        %v1430 = vmul.f32 %v1414, %v1428
        %v1431 = vmul.f32 %v1415, %v1429
        %v1432 = vpack.c.bf16 %v1431, %v1430
        %v1433 = vld [vmem:[%s12] sm:$0xf]
        %v1434 = vld [vmem:[%s12 + $0x4] sm:$0xf]
        %v1435 = vld [vmem:[%s12 + $0x8] sm:$0xf]
        %v1436 = vld [vmem:[%s12 + $0xc] sm:$0xf]
        %v1437 = vld [vmem:[%s12 + $0x10] sm:$0xf]
        %v1438 = vld [vmem:[%s12 + $0x14] sm:$0xf]
        %v1439 = vld [vmem:[%s12 + $0x18] sm:$0xf]
        %v1440 = vld [vmem:[%s12 + $0x1c] sm:$0xf]
        %v1441 = vld [vmem:[%s13] sm:$0x1]
        %v1443 = vlaneseq
        %v1444 = vshrl.u32 %v1443, 7
        %v1445 = vsub.s32 0, %v1444
        %v1446 = vrot.slane %v1441, %v1445
        %v1456 = vunpack.c.l.b16 %v1433
        %v1457 = vunpack.c.l.b16 %v1434
        %v1458 = vunpack.c.l.b16 %v1435
        %v1459 = vunpack.c.l.b16 %v1436
        %v1460 = vunpack.c.l.b16 %v1437
        %v1461 = vunpack.c.l.b16 %v1438
        %v1462 = vunpack.c.l.b16 %v1439
        %v1463 = vunpack.c.l.b16 %v1440
        %v1464 = vpack.c.b16 %v1457, %v1456
        %v1465 = vpack.c.b16 %v1459, %v1458
        %v1466 = vpack.c.b16 %v1461, %v1460
        %v1467 = vpack.c.b16 %v1463, %v1462
        %vm1472 = vcmask 523264
        %v1474 = vsel %vm1472, %v1432, 0
        %1476 = vmatprep.subr.bf16.mxu0 0
        %1477 = vmatpush1.bf16.msra.mxu0 %v1464
        %1478 = vmatprep.subr.bf16.mxu0 0
        %1479 = vmatpush1.bf16.msra.mxu0 %v1465
        %1480 = vmatprep.subr.bf16.mxu0 0
        %1481 = vmatpush1.bf16.msra.mxu0 %v1466
        %1482 = vmatprep.subr.bf16.mxu0 0
        %1483 = vmatpush1.bf16.msra.mxu0 %v1467
        %1484 = vmatprep.subr.bf16.mxu0 0
        %1485 = vmatpush1.bf16.msra.mxu0 0
        %1486 = vmatprep.subr.bf16.mxu0 0
        %1487 = vmatpush1.bf16.msra.mxu0 0
        %1488 = vmatprep.subr.bf16.mxu0 0
        %1489 = vmatpush1.bf16.msra.mxu0 0
        %1490 = vmatprep.subr.bf16.mxu0 0
        %1491 = vmatpush1.bf16.msra.mxu0 0
        %1492 = vmatprep.subr.bf16.mxu0 0
        %1493 = vmatpush1.bf16.msra.mxu0 0
        %1494 = vmatprep.subr.bf16.mxu0 0
        %1495 = vmatpush1.bf16.msra.mxu0 0
        %1496 = vmatprep.subr.bf16.mxu0 0
        %1497 = vmatpush1.bf16.msra.mxu0 0
        %1498 = vmatprep.subr.bf16.mxu0 0
        %1499 = vmatpush1.bf16.msra.mxu0 0
        %1500 = vmatprep.subr.bf16.mxu0 0
        %1501 = vmatpush1.bf16.msra.mxu0 0
        %1502 = vmatprep.subr.bf16.mxu0 0
        %1503 = vmatpush1.bf16.msra.mxu0 0
        %1504 = vmatprep.subr.bf16.mxu0 0
        %1505 = vmatpush1.bf16.msra.mxu0 0
        %1506 = vmatprep.subr.bf16.mxu0 0
        %1507 = vmatpush1.bf16.msra.mxu0 0
        %1508 = vmatprep.mubr.bf16.mxu0 0
        %1509 = vmatmul.mubr.bf16.gmra.mrb[0].mxu0 %v1474
        %v1510 = vpop.f32.mrb[0].mxu0
        %v1511 = vadd.f32 %v1446, %v1510
        %v1512 = vpop.f32.mrb[0].mxu0
        %v1513 = vpop.f32.mrb[0].mxu0
        %v1514 = vadd.f32 %v1446, %v1513
        %v1515 = vpop.f32.mrb[0].mxu0
        %1516 = vdwg.mxu0
        %v1517 = vadd.f32 %v1511, %v1300
        %v1518 = vadd.f32 %v1514, %v1301
        %v1519 = vmul.f32 %v1517, %v1293
        %v1520 = vmul.f32 %v1518, %v1298
        %1521 = vst.msk [vmem:[%s517] sm:$0xff] %vm548, %v1519
        %1522 = vst.msk [vmem:[%s517 + $0x8] sm:$0xff] %vm548, %v1520
        %s1523 = sand.u32 %s350, 1
        %s1524 = scalar_lea.sflag [#allocation3], %s1523
        %s1525 = sand.u32 %s350, 1
        %s1526 = smul.addr %s1525, 16
        %s1527 = scalar_lea.vmem [#allocation2], %s1526
        %s1528 = sand.u32 %s376, 1
        %s1529 = scalar_lea.sflag [#allocation5], %s1528
        %s1530 = sand.u32 %s376, 1
        %s1531 = smul.addr %s1530, 32
        %s1532 = scalar_lea.vmem [#allocation4], %s1531
        // Predicated region
        $region77: #{encoder_layer_forward.1} parent=75 // pred_check
          %p1533 = pneg %p360
        $region78: #{encoder_layer_forward.1} parent=75 // pred_check_branch
          %1535 = sbr.rel (%p1533) target = $region80
        $region79: #{encoder_layer_forward.1} parent=75 // pred_region
          %s1537 = ssub.s32 256, 256
          %1538 = vsyncadd %s1524, %s1537
          %s1539 = smul.addr %s33, 2
          %s1540 = smul.addr %s1539, 128
          %s1541 = scalar_lea.hbm %s14, %s1540
          %s1542 = sshll.u32 %s1527, 4
          %s1543 = int_to_ptr.vmem [resolvable:$true] %s1542
          %1548 = dma.vmem_to_hbm [thread:$0]  %s1543, 256, %s1541, %s1524, 128, 128, 8
        $region80: #{encoder_layer_forward.1} parent=75 // pred_fallthru
          _
        // Predicated region
        $region81: #{encoder_layer_forward.1} parent=75 // pred_check
          %p1549 = pneg %p386
        $region82: #{encoder_layer_forward.1} parent=75 // pred_check_branch
          %1551 = sbr.rel (%p1549) target = $region84
        $region83: #{encoder_layer_forward.1} parent=75 // pred_region
          %s1553 = ssub.s32 512, 512
          %1554 = vsyncadd %s1529, %s1553
          %s1555 = smul.addr %s33, 8
          %s1556 = smul.addr %s1555, 64
          %s1557 = scalar_lea.hbm %s15, %s1556
          %s1558 = sshll.u32 %s1532, 4
          %s1559 = int_to_ptr.vmem [resolvable:$true] %s1558
          %1564 = dma.vmem_to_hbm [thread:$0]  %s1559, 512, %s1557, %s1529, 64, 64, 4
        $region84: #{encoder_layer_forward.1} parent=75 // pred_fallthru
          _
      $region76: #{encoder_layer_forward.1} parent=5 // pred_fallthru
        _
      %p1565 = scmp.le.s32.totalorder 2, %s28
      // Predicated region
      $region85: #{encoder_layer_forward.1} parent=5 // pred_check
        %p1566 = pneg %p1565
      $region86: #{encoder_layer_forward.1} parent=5 // pred_check_branch
        %1568 = sbr.rel (%p1566) target = $region88
      $region87: #{encoder_layer_forward.1} parent=5 // pred_region
        %s1569 = ssub.s32 %s28, 2
        // Predicated region
        $region89: #{encoder_layer_forward.1} parent=87 // pred_check
          %p1570 = pneg %p366
        $region90: #{encoder_layer_forward.1} parent=87 // pred_check_branch
          %1572 = sbr.rel (%p1570) target = $region92
        $region91: #{encoder_layer_forward.1} parent=87 // pred_region
          %s1573 = sand.u32 %s351, 1
          %s1574 = scalar_lea.sflag [#allocation3], %s1573
          %s1575 = sand.u32 %s351, 1
          %s1576 = smul.addr %s1575, 16
          %s1577 = scalar_lea.vmem [#allocation2], %s1576
          %1578 = dma.done %s1574, 256
        $region92: #{encoder_layer_forward.1} parent=87 // pred_fallthru
          _
        // Predicated region
        $region93: #{encoder_layer_forward.1} parent=87 // pred_check
          %p1579 = pneg %p392
        $region94: #{encoder_layer_forward.1} parent=87 // pred_check_branch
          %1581 = sbr.rel (%p1579) target = $region96
        $region95: #{encoder_layer_forward.1} parent=87 // pred_region
          %s1582 = sand.u32 %s377, 1
          %s1583 = scalar_lea.sflag [#allocation5], %s1582
          %s1584 = sand.u32 %s377, 1
          %s1585 = smul.addr %s1584, 32
          %s1586 = scalar_lea.vmem [#allocation4], %s1585
          %1587 = dma.done %s1583, 512
        $region96: #{encoder_layer_forward.1} parent=87 // pred_fallthru
          _
      $region88: #{encoder_layer_forward.1} parent=5 // pred_fallthru
        _
    $region6: #{encoder_layer_forward.1} parent=1 // loop_footer
      %s32 = sadd.s32 1, %s28
    $region7: #{encoder_layer_forward.1} parent=1 // loop_footer_branch
      %27 = sbr.rel target = $region3
    $region8: #{encoder_layer_forward.1} parent=1 // loop_exit
      _
    %1588 = vsyncpa [#allocation3], 1
    %s1589 = scalar_lea.sflag [#allocation3], 1
    %1590 = vsyncpa %s1589, 1
    %1591 = vsyncpa [#allocation5], 1
    %s1592 = scalar_lea.sflag [#allocation5], 1
    %1593 = vsyncpa %s1592, 1

</llo_original>
